<compile_context>
chip_gen: v7x
topology: tpu7x:2x2x1
jax: 0.10.0
libtpu: 0.0.40
codegen_flags: <defaults>
</compile_context>

<pallas_src>
import math
import jax
import jax.numpy as jnp
from jax.experimental import pallas as pl
from jax.experimental.pallas import tpu as pltpu

# ---------------- small synthetic dims ----------------
B = 2                               # batch
L = 8                               # sequence length
D_MODEL = 32                        # input_dim
EXPAND = 2                          # Mamba expand
D_INNER = EXPAND * D_MODEL          # 64
D_STATE = 16                        # Mamba d_state (N)
D_CONV = 4                          # Mamba d_conv (K)
DT_RANK = math.ceil(D_MODEL / 16)   # 2
EXP_FACTOR = 2                      # FFN expansion
D_FF = EXP_FACTOR * D_MODEL         # 64
LN_EPS = 1e-5

BL = B * L                          # flattened token count
XP_LANES = 128                      # packed x_proj output width (lane-dense)


# ---------------- elementwise helpers (VPU/EUP ops) ---------------------------
def _sigmoid(x):
    # reciprocal on the EUP slot (approx) instead of a VALU divide
    return pl.reciprocal(1.0 + jnp.exp(-x), approx=True)


def _silu(x):
    return x * _sigmoid(x)


def _softplus(x):
    # matches torch.nn.functional.softplus (threshold=20); overflow-safe form
    stable = jnp.maximum(x, 0.0) + jnp.log(1.0 + jnp.exp(-jnp.abs(x)))
    return jnp.where(x > 20.0, x, stable)


def _erf(x):
    # Abramowitz & Stegun 7.1.26, |err| < 1.5e-7 (float32-accurate).
    # TODO(synk): torch.nn.GELU() uses exact erf; Mosaic has no guaranteed erf
    # lowering so a float32-accurate polynomial is used instead.
    p = 0.3275911
    a1, a2, a3, a4, a5 = (0.254829592, -0.284496736, 1.421413741,
                          -1.453152027, 1.061405429)
    sgn = jnp.where(x >= 0.0, 1.0, -1.0)
    ax = jnp.abs(x)
    t = 1.0 / (1.0 + p * ax)
    poly = ((((a5 * t + a4) * t + a3) * t + a2) * t + a1) * t
    return sgn * (1.0 - poly * jnp.exp(-ax * ax))


def _gelu(x):
    # exact (erf-based) GELU, matching torch.nn.GELU() default
    return 0.5 * x * (1.0 + _erf(x * 0.7071067811865476))


def _layernorm(v, g, b):
    mu = jnp.mean(v, axis=-1, keepdims=True)
    c = v - mu
    var = jnp.mean(c * c, axis=-1, keepdims=True)
    return c * jax.lax.rsqrt(var + LN_EPS) * g + b


def _bdot(a, w_ref):
    # bf16 operands, f32 MXU accumulation (native path on v5e/v6e/v7x)
    return jnp.dot(a.astype(jnp.bfloat16), w_ref[...],
                   preferred_element_type=jnp.float32)


# ---------------- fused MambaBlock kernel (single invocation, no grid) --------
def _mamba_block_kernel(x_ref, w_in_ref, conv_w_ref, conv_b_ref, w_xp_ref,
                        b_dt_ref, a_log_ref, d_skip_ref, w_out_ref,
                        ln1_g_ref, ln1_b_ref,
                        ffn_w1_ref, ffn_b1_ref, ffn_w2_ref, ffn_b2_ref,
                        ln2_g_ref, ln2_b_ref,
                        o_ref, h_all_sc):
    x = x_ref[...]                                                      # (BL, D)

    # ---- Mamba: fused in_proj (bias=False); output is 128 lanes wide ----
    xz = _bdot(x, w_in_ref)                                             # (BL, 2*Di)
    xin = xz[:, :D_INNER]                                               # conv branch
    z = xz[:, D_INNER:]                                                 # gate branch

    # ---- causal depthwise conv1d via sublane roll + position mask ---------
    # Tap k (shift s = K-1-k) needs xin[j - s]; pltpu.roll(xin, s, 0) supplies
    # it on the XLU slot, and `pos >= s` zeroes the first s positions of every
    # sequence (causality + no leakage across the flattened batch boundary).
    cw = conv_w_ref[...]                                                # (K, Di)
    pos = jax.lax.broadcasted_iota(jnp.int32, (BL, D_INNER), 0) % L
    acc = xin * cw[D_CONV - 1:D_CONV, :]                                # tap s = 0
    for k in range(D_CONV - 1):
        s = D_CONV - 1 - k
        shifted = pltpu.roll(xin, s, axis=0)                            # rows -> +s
        shifted = jnp.where(pos >= s, shifted, 0.0)
        acc = acc + shifted * cw[k:k + 1, :]
    xc = _silu(acc + conv_b_ref[...])                                   # (BL, Di)

    # ---- packed x_proj + folded dt_proj, zero-padded to 128 output lanes ----
    # columns: [w_xdt @ w_dt (Di) | w_xB (N) | w_xC (N) | zeros (32)]
    xp = _bdot(xc, w_xp_ref)                                            # (BL, 128)
    dt = _softplus(xp[:, :D_INNER] + b_dt_ref[...])                     # (BL, Di)
    Bm = xp[:, D_INNER:D_INNER + D_STATE]                               # (BL, N)
    Cm = xp[:, D_INNER + D_STATE:D_INNER + 2 * D_STATE]                 # (BL, N)

    A = -jnp.exp(a_log_ref[...])                                        # (N, Di)
    u = dt * xc                                                         # (BL, Di)
    # hoisted out of the serial chain: one big EUP exp + one big VPU multiply
    dA_all = jnp.exp(dt[:, None, :] * A[None, :, :])                    # (BL, N, Di)
    dBu_all = Bm[:, :, None] * u[:, None, :]                            # (BL, N, Di)

    # ---- selective scan: pure 2-vreg FMA chain; h history store is off-chain
    # TODO(synk): for realistic L use chunked lax.fori_loop(..., unroll=4..8).
    for b in range(B):
        h = jnp.zeros((D_STATE, D_INNER), jnp.float32)
        for t in range(L):
            i = b * L + t
            h = dA_all[i] * h + dBu_all[i]                              # recurrence
            h_all_sc[i] = h                                             # off-chain

    # ---- C contraction after the scan: one big multiply + sublane reduce ----
    y = jnp.sum(Cm[:, :, None] * h_all_sc[...], axis=1)                 # (BL, Di)
    y = y + xc * d_skip_ref[...]                                        # skip D*x
    y = y * _silu(z)                                                    # gate
    ssm = _bdot(y, w_out_ref)                                           # (BL, D)

    # ---- SubLayerConnect 1: LayerNorm(x + Mamba(x))  (post-norm) ----------
    h1 = _layernorm(x + ssm, ln1_g_ref[...], ln1_b_ref[...])

    # ---- FFN: GELU(fc1) -> GELU(fc2)  (GELU after BOTH linears, as in ref) --
    f = _gelu(_bdot(h1, ffn_w1_ref) + ffn_b1_ref[...])
    f = _gelu(_bdot(f, ffn_w2_ref) + ffn_b2_ref[...])

    # ---- SubLayerConnect 2: LayerNorm(h1 + FFN(h1)) -------------------------
    o_ref[...] = _layernorm(h1 + f, ln2_g_ref[...], ln2_b_ref[...])


# ---------------- wrapper ------------------------------------------------------
_VMEM_SPEC = pl.BlockSpec(memory_space=pltpu.MemorySpace.VMEM)


def mamba_block(x, p):
    """z = LayerNorm(y + FFN(y)),  y = LayerNorm(x + Mamba(x));  dropout = eval."""
    args = (jnp.reshape(x, (BL, D_MODEL)),
            p["w_in"], p["conv_w"], p["conv_b"], p["w_xp"], p["b_dt"],
            p["a_log"], p["d_skip"], p["w_out"],
            p["ln1_g"], p["ln1_b"],
            p["ffn_w1"], p["ffn_b1"], p["ffn_w2"], p["ffn_b2"],
            p["ln2_g"], p["ln2_b"])
    out = pl.pallas_call(
        _mamba_block_kernel,
        out_shape=jax.ShapeDtypeStruct((BL, D_MODEL), jnp.float32),
        in_specs=[_VMEM_SPEC] * len(args),
        out_specs=_VMEM_SPEC,
        scratch_shapes=[pltpu.VMEM((BL, D_STATE, D_INNER), jnp.float32)],  # h history
        cost_estimate=pl.CostEstimate(flops=700_000, transcendentals=25_000,
                                      bytes_accessed=120_000),
    )(*args)
    return jnp.reshape(out, (B, L, D_MODEL))


# ---------------- deterministic parameter init (with host-side packing) -------
def init_params(key):
    ks = jax.random.split(key, 13)

    def rnd(k, shape, scale):
        return scale * jax.random.normal(k, shape, jnp.float32)

    # Mamba(d_model=D_MODEL): in_proj/x_proj/out_proj bias=False,
    # conv & dt_proj bias=True.
    w_in_x = rnd(ks[0], (D_MODEL, D_INNER), 0.1)
    w_in_z = rnd(ks[1], (D_MODEL, D_INNER), 0.1)
    w_xdt = rnd(ks[4], (D_INNER, DT_RANK), 0.1)
    w_xb = rnd(ks[5], (D_INNER, D_STATE), 0.1)
    w_xc = rnd(ks[6], (D_INNER, D_STATE), 0.1)
    w_dt = rnd(ks[7], (DT_RANK, D_INNER), 0.5)

    p = {}
    # packed in_proj: single lane-dense (D_MODEL, 128) weight, bf16 for the MXU
    p["w_in"] = jnp.concatenate([w_in_x, w_in_z], axis=1).astype(jnp.bfloat16)
    p["conv_w"] = rnd(ks[2], (D_CONV, D_INNER), 0.2)   # depthwise kernel, (K, C), f32
    p["conv_b"] = rnd(ks[3], (1, D_INNER), 0.1)
    # packed x_proj: [x_proj_dt @ dt_proj | x_proj_B | x_proj_C | 0-pad to 128];
    # folding the low-rank dt projection is exact (no nonlinearity between dots).
    w_xp = jnp.concatenate([w_xdt @ w_dt, w_xb, w_xc], axis=1)           # (Di, 96)
    w_xp = jnp.pad(w_xp, ((0, 0), (0, XP_LANES - w_xp.shape[1])))        # (Di, 128)
    p["w_xp"] = w_xp.astype(jnp.bfloat16)
    p["b_dt"] = jnp.full((1, D_INNER), -2.0, jnp.float32)  # small-dt style init
    # A = arange(1..N) repeated over channels; stored (N, Di) for the scan layout
    p["a_log"] = jnp.log(jnp.broadcast_to(
        jnp.arange(1, D_STATE + 1, dtype=jnp.float32)[:, None],
        (D_STATE, D_INNER)))
    p["d_skip"] = jnp.ones((1, D_INNER), jnp.float32)
    p["w_out"] = rnd(ks[8], (D_INNER, D_MODEL), 0.1).astype(jnp.bfloat16)
    # FFN(input_dim=D_MODEL, exp_factor=EXP_FACTOR)
    p["ffn_w1"] = rnd(ks[9], (D_MODEL, D_FF), 0.1).astype(jnp.bfloat16)
    p["ffn_b1"] = rnd(ks[10], (1, D_FF), 0.1)
    p["ffn_w2"] = rnd(ks[11], (D_FF, D_MODEL), 0.1).astype(jnp.bfloat16)
    p["ffn_b2"] = rnd(ks[12], (1, D_MODEL), 0.1)
    # LayerNorms (PyTorch default init: weight=1, bias=0)
    p["ln1_g"] = jnp.ones((1, D_MODEL), jnp.float32)
    p["ln1_b"] = jnp.zeros((1, D_MODEL), jnp.float32)
    p["ln2_g"] = jnp.ones((1, D_MODEL), jnp.float32)
    p["ln2_b"] = jnp.zeros((1, D_MODEL), jnp.float32)
    return p


# ---------------- pure-JAX reference (same math, no Pallas primitives) --------
def _ref_forward(x, p):
    bf16 = jnp.bfloat16

    def bdot(a, w):
        return jnp.dot(a.astype(bf16), w.astype(bf16),
                       preferred_element_type=jnp.float32)

    def sig(v):
        return 1.0 / (1.0 + jnp.exp(-v))

    def ln(v, g, b_):
        mu = v.mean(-1, keepdims=True)
        c = v - mu
        return c * jax.lax.rsqrt((c * c).mean(-1, keepdims=True) + LN_EPS) * g + b_

    def gelu(v):
        return 0.5 * v * (1.0 + jax.lax.erf(v * 0.7071067811865476))

    xf = jnp.reshape(x, (BL, D_MODEL)).astype(jnp.float32)
    xz = bdot(xf, p["w_in"])
    xin, z = xz[:, :D_INNER], xz[:, D_INNER:]
    xin_b = xin.reshape(B, L, D_INNER)
    padded = jnp.pad(xin_b, ((0, 0), (D_CONV - 1, 0), (0, 0)))
    conv = sum(padded[:, k:k + L, :] * p["conv_w"][k][None, None, :]
               for k in range(D_CONV))
    conv = conv.reshape(BL, D_INNER) + p["conv_b"]
    xc = conv * sig(conv)
    xp = bdot(xc, p["w_xp"])
    dpre = xp[:, :D_INNER] + p["b_dt"]
    dt = jnp.where(dpre > 20.0, dpre,
                   jnp.maximum(dpre, 0.0) + jnp.log(1.0 + jnp.exp(-jnp.abs(dpre))))
    Bm = xp[:, D_INNER:D_INNER + D_STATE]
    Cm = xp[:, D_INNER + D_STATE:D_INNER + 2 * D_STATE]
    A = -jnp.exp(p["a_log"])
    u = dt * xc
    ys = []
    for b in range(B):
        h = jnp.zeros((D_STATE, D_INNER), jnp.float32)
        for t in range(L):
            i = b * L + t
            h = jnp.exp(dt[i][None, :] * A) * h + Bm[i][:, None] * u[i][None, :]
            ys.append(jnp.sum(Cm[i][:, None] * h, axis=0))
    y = jnp.stack(ys, axis=0) + xc * p["d_skip"]
    y = y * (z * sig(z))
    ssm = bdot(y, p["w_out"])
    h1 = ln(xf + ssm, p["ln1_g"], p["ln1_b"])
    f = gelu(bdot(h1, p["ffn_w1"]) + p["ffn_b1"])
    f = gelu(bdot(f, p["ffn_w2"]) + p["ffn_b2"])
    return ln(h1 + f, p["ln2_g"], p["ln2_b"]).reshape(B, L, D_MODEL)


if __name__ == "__main__":
    key = jax.random.PRNGKey(0)
    kx, kp = jax.random.split(key)
    x = jax.random.normal(kx, (B, L, D_MODEL), jnp.float32)
    params = init_params(kp)

    out = jax.jit(mamba_block)(x, params)
    jax.block_until_ready(out)

    assert out.shape == (B, L, D_MODEL), out.shape
    assert bool(jnp.all(jnp.isfinite(out)))
    ref = _ref_forward(x, params)
    err = float(jnp.max(jnp.abs(out - ref)))
    assert err < 1e-1, f"max |kernel - reference| = {err}"
    print("KERNEL_OK")
</pallas_src>

<mosaic_0001>
module attributes {stable_mosaic.version = 11 : i64} {
  func.func @_mamba_block_kernel(%arg0: memref<16x32xf32, #tpu.memory_space<vmem>>, %arg1: memref<32x128xbf16, #tpu.memory_space<vmem>>, %arg2: memref<4x64xf32, #tpu.memory_space<vmem>>, %arg3: memref<1x64xf32, #tpu.memory_space<vmem>>, %arg4: memref<64x128xbf16, #tpu.memory_space<vmem>>, %arg5: memref<1x64xf32, #tpu.memory_space<vmem>>, %arg6: memref<16x64xf32, #tpu.memory_space<vmem>>, %arg7: memref<1x64xf32, #tpu.memory_space<vmem>>, %arg8: memref<64x32xbf16, #tpu.memory_space<vmem>>, %arg9: memref<1x32xf32, #tpu.memory_space<vmem>>, %arg10: memref<1x32xf32, #tpu.memory_space<vmem>>, %arg11: memref<32x64xbf16, #tpu.memory_space<vmem>>, %arg12: memref<1x64xf32, #tpu.memory_space<vmem>>, %arg13: memref<64x32xbf16, #tpu.memory_space<vmem>>, %arg14: memref<1x32xf32, #tpu.memory_space<vmem>>, %arg15: memref<1x32xf32, #tpu.memory_space<vmem>>, %arg16: memref<1x32xf32, #tpu.memory_space<vmem>>, %arg17: memref<16x32xf32, #tpu.memory_space<vmem>>, %arg18: memref<16x16x64xf32, #tpu.memory_space<vmem>>) attributes {dimension_semantics = [], scalar_prefetch = 0 : i64, scratch_operands = 1 : i64, tpu.core_type = #tpu.core_type<tc>} {
    %c0 = arith.constant 0 : index
    %c0_0 = arith.constant 0 : index
    %0 = vector.load %arg0[%c0, %c0_0] : memref<16x32xf32, #tpu.memory_space<vmem>>, vector<16x32xf32>
    %1 = arith.truncf %0 : vector<16x32xf32> to vector<16x32xbf16>
    %c0_1 = arith.constant 0 : index
    %c0_2 = arith.constant 0 : index
    %2 = vector.load %arg1[%c0_1, %c0_2] : memref<32x128xbf16, #tpu.memory_space<vmem>>, vector<32x128xbf16>
    %cst = arith.constant dense<0.000000e+00> : vector<16x128xf32>
    %3 = tpu.matmul %1, %2, %cst {dimension_numbers = #tpu.dot_dimension_numbers<[1], [0], [0], [1], [0, 0, 1, 1], [], []>} : vector<16x32xbf16>, vector<32x128xbf16>, vector<16x128xf32> -> vector<16x128xf32>
    %4 = vector.extract_strided_slice %3 {offsets = [0, 0], sizes = [16, 64], strides = [1, 1]} : vector<16x128xf32> to vector<16x64xf32>
    %5 = vector.extract_strided_slice %3 {offsets = [0, 64], sizes = [16, 64], strides = [1, 1]} : vector<16x128xf32> to vector<16x64xf32>
    %c0_3 = arith.constant 0 : index
    %c0_4 = arith.constant 0 : index
    %6 = vector.load %arg2[%c0_3, %c0_4] : memref<4x64xf32, #tpu.memory_space<vmem>>, vector<4x64xf32>
    %7 = tpu.iota {dimensions = array<i32: 0>} : vector<16x64xi32>
    %c8_i32 = arith.constant 8 : i32
    %c0_i32 = arith.constant 0 : i32
    %8 = arith.cmpi eq, %c8_i32, %c0_i32 : i32
    %c1_i32 = arith.constant 1 : i32
    %9 = arith.select %8, %c1_i32, %c8_i32 : i32
    %10 = vector.broadcast %9 : i32 to vector<16x64xi32>
    %11 = arith.remsi %7, %10 : vector<16x64xi32>
    %c0_i32_5 = arith.constant 0 : i32
    %12 = vector.broadcast %c0_i32_5 : i32 to vector<16x64xi32>
    %13 = arith.cmpi ne, %11, %12 : vector<16x64xi32>
    %c0_i32_6 = arith.constant 0 : i32
    %14 = vector.broadcast %c0_i32_6 : i32 to vector<16x64xi32>
    %15 = arith.cmpi slt, %11, %14 : vector<16x64xi32>
    %c0_i32_7 = arith.constant 0 : i32
    %16 = arith.cmpi slt, %9, %c0_i32_7 : i32
    %17 = vector.broadcast %16 : i1 to vector<16x64xi1>
    %18 = vector.broadcast %17 : vector<16x64xi1> to vector<16x64xi1>
    %19 = arith.xori %15, %18 : vector<16x64xi1>
    %20 = arith.andi %19, %13 : vector<16x64xi1>
    %21 = vector.broadcast %9 : i32 to vector<16x64xi32>
    %22 = arith.addi %11, %21 : vector<16x64xi32>
    %23 = arith.select %20, %22, %11 : vector<16x64xi1>, vector<16x64xi32>
    %24 = vector.extract_strided_slice %6 {offsets = [3, 0], sizes = [1, 64], strides = [1, 1]} : vector<4x64xf32> to vector<1x64xf32>
    %25 = vector.broadcast %24 : vector<1x64xf32> to vector<16x64xf32>
    %26 = arith.mulf %4, %25 : vector<16x64xf32>
    %c3_i32 = arith.constant 3 : i32
    %27 = tpu.dynamic_rotate %4 by %c3_i32 dim 0 : vector<16x64xf32>, i32 -> vector<16x64xf32>
    %c3_i32_8 = arith.constant 3 : i32
    %28 = vector.broadcast %c3_i32_8 : i32 to vector<16x64xi32>
    %29 = arith.cmpi sge, %23, %28 : vector<16x64xi32>
    %cst_9 = arith.constant 0.000000e+00 : f32
    %30 = vector.broadcast %cst_9 : f32 to vector<16x64xf32>
    %31 = arith.select %29, %27, %30 : vector<16x64xi1>, vector<16x64xf32>
    %32 = vector.extract_strided_slice %6 {offsets = [0, 0], sizes = [1, 64], strides = [1, 1]} : vector<4x64xf32> to vector<1x64xf32>
    %33 = vector.broadcast %32 : vector<1x64xf32> to vector<16x64xf32>
    %34 = arith.mulf %31, %33 : vector<16x64xf32>
    %35 = arith.addf %26, %34 : vector<16x64xf32>
    %c2_i32 = arith.constant 2 : i32
    %36 = tpu.dynamic_rotate %4 by %c2_i32 dim 0 : vector<16x64xf32>, i32 -> vector<16x64xf32>
    %c2_i32_10 = arith.constant 2 : i32
    %37 = vector.broadcast %c2_i32_10 : i32 to vector<16x64xi32>
    %38 = arith.cmpi sge, %23, %37 : vector<16x64xi32>
    %cst_11 = arith.constant 0.000000e+00 : f32
    %39 = vector.broadcast %cst_11 : f32 to vector<16x64xf32>
    %40 = arith.select %38, %36, %39 : vector<16x64xi1>, vector<16x64xf32>
    %41 = vector.extract_strided_slice %6 {offsets = [1, 0], sizes = [1, 64], strides = [1, 1]} : vector<4x64xf32> to vector<1x64xf32>
    %42 = vector.broadcast %41 : vector<1x64xf32> to vector<16x64xf32>
    %43 = arith.mulf %40, %42 : vector<16x64xf32>
    %44 = arith.addf %35, %43 : vector<16x64xf32>
    %c1_i32_12 = arith.constant 1 : i32
    %45 = tpu.dynamic_rotate %4 by %c1_i32_12 dim 0 : vector<16x64xf32>, i32 -> vector<16x64xf32>
    %c1_i32_13 = arith.constant 1 : i32
    %46 = vector.broadcast %c1_i32_13 : i32 to vector<16x64xi32>
    %47 = arith.cmpi sge, %23, %46 : vector<16x64xi32>
    %cst_14 = arith.constant 0.000000e+00 : f32
    %48 = vector.broadcast %cst_14 : f32 to vector<16x64xf32>
    %49 = arith.select %47, %45, %48 : vector<16x64xi1>, vector<16x64xf32>
    %50 = vector.extract_strided_slice %6 {offsets = [2, 0], sizes = [1, 64], strides = [1, 1]} : vector<4x64xf32> to vector<1x64xf32>
    %51 = vector.broadcast %50 : vector<1x64xf32> to vector<16x64xf32>
    %52 = arith.mulf %49, %51 : vector<16x64xf32>
    %53 = arith.addf %44, %52 : vector<16x64xf32>
    %c0_15 = arith.constant 0 : index
    %c0_16 = arith.constant 0 : index
    %54 = vector.load %arg3[%c0_15, %c0_16] : memref<1x64xf32, #tpu.memory_space<vmem>>, vector<1x64xf32>
    %55 = vector.broadcast %54 : vector<1x64xf32> to vector<16x64xf32>
    %56 = arith.addf %53, %55 : vector<16x64xf32>
    %cst_17 = arith.constant 0.000000e+00 : f32
    %57 = vector.broadcast %cst_17 : f32 to vector<16x64xf32>
    %58 = arith.subf %57, %56 : vector<16x64xf32>
    %59 = math.exp %58 : vector<16x64xf32>
    %cst_18 = arith.constant 1.000000e+00 : f32
    %60 = vector.broadcast %cst_18 : f32 to vector<16x64xf32>
    %61 = arith.addf %60, %59 : vector<16x64xf32>
    %62 = tpu.reciprocal %61 {approx = true} : vector<16x64xf32> -> vector<16x64xf32>
    %63 = arith.mulf %56, %62 : vector<16x64xf32>
    %64 = arith.truncf %63 : vector<16x64xf32> to vector<16x64xbf16>
    %c0_19 = arith.constant 0 : index
    %c0_20 = arith.constant 0 : index
    %65 = vector.load %arg4[%c0_19, %c0_20] : memref<64x128xbf16, #tpu.memory_space<vmem>>, vector<64x128xbf16>
    %cst_21 = arith.constant dense<0.000000e+00> : vector<16x128xf32>
    %66 = tpu.matmul %64, %65, %cst_21 {dimension_numbers = #tpu.dot_dimension_numbers<[1], [0], [0], [1], [0, 0, 1, 1], [], []>} : vector<16x64xbf16>, vector<64x128xbf16>, vector<16x128xf32> -> vector<16x128xf32>
    %67 = vector.extract_strided_slice %66 {offsets = [0, 0], sizes = [16, 64], strides = [1, 1]} : vector<16x128xf32> to vector<16x64xf32>
    %c0_22 = arith.constant 0 : index
    %c0_23 = arith.constant 0 : index
    %68 = vector.load %arg5[%c0_22, %c0_23] : memref<1x64xf32, #tpu.memory_space<vmem>>, vector<1x64xf32>
    %69 = vector.broadcast %68 : vector<1x64xf32> to vector<16x64xf32>
    %70 = arith.addf %67, %69 : vector<16x64xf32>
    %cst_24 = arith.constant 0.000000e+00 : f32
    %71 = vector.broadcast %cst_24 : f32 to vector<16x64xf32>
    %72 = arith.maximumf %70, %71 : vector<16x64xf32>
    %73 = math.absf %70 : vector<16x64xf32>
    %cst_25 = arith.constant 0.000000e+00 : f32
    %74 = vector.broadcast %cst_25 : f32 to vector<16x64xf32>
    %75 = arith.subf %74, %73 : vector<16x64xf32>
    %76 = math.exp %75 : vector<16x64xf32>
    %cst_26 = arith.constant 1.000000e+00 : f32
    %77 = vector.broadcast %cst_26 : f32 to vector<16x64xf32>
    %78 = arith.addf %77, %76 : vector<16x64xf32>
    %79 = math.log %78 : vector<16x64xf32>
    %80 = arith.addf %72, %79 : vector<16x64xf32>
    %cst_27 = arith.constant 2.000000e+01 : f32
    %81 = vector.broadcast %cst_27 : f32 to vector<16x64xf32>
    %82 = arith.cmpf ogt, %70, %81 : vector<16x64xf32>
    %83 = arith.select %82, %70, %80 : vector<16x64xi1>, vector<16x64xf32>
    %84 = vector.extract_strided_slice %66 {offsets = [0, 64], sizes = [16, 16], strides = [1, 1]} : vector<16x128xf32> to vector<16x16xf32>
    %85 = vector.extract_strided_slice %66 {offsets = [0, 80], sizes = [16, 16], strides = [1, 1]} : vector<16x128xf32> to vector<16x16xf32>
    %c0_28 = arith.constant 0 : index
    %c0_29 = arith.constant 0 : index
    %86 = vector.load %arg6[%c0_28, %c0_29] : memref<16x64xf32, #tpu.memory_space<vmem>>, vector<16x64xf32>
    %87 = math.exp %86 : vector<16x64xf32>
    %cst_30 = arith.constant 0.000000e+00 : f32
    %88 = vector.broadcast %cst_30 : f32 to vector<16x64xf32>
    %89 = arith.subf %88, %87 : vector<16x64xf32>
    %90 = arith.mulf %83, %63 : vector<16x64xf32>
    %91 = vector.shape_cast %83 : vector<16x64xf32> to vector<16x1x64xf32>
    %92 = vector.shape_cast %89 : vector<16x64xf32> to vector<1x16x64xf32>
    %93 = vector.broadcast %91 : vector<16x1x64xf32> to vector<16x16x64xf32>
    %94 = vector.broadcast %92 : vector<1x16x64xf32> to vector<16x16x64xf32>
    %95 = arith.mulf %93, %94 : vector<16x16x64xf32>
    %96 = math.exp %95 : vector<16x16x64xf32>
    %97 = vector.shape_cast %84 : vector<16x16xf32> to vector<16x16x1xf32>
    %98 = vector.shape_cast %90 : vector<16x64xf32> to vector<16x1x64xf32>
    %99 = vector.broadcast %97 : vector<16x16x1xf32> to vector<16x16x64xf32>
    %100 = vector.broadcast %98 : vector<16x1x64xf32> to vector<16x16x64xf32>
    %101 = arith.mulf %99, %100 : vector<16x16x64xf32>
    %cst_31 = arith.constant 0.000000e+00 : f32
    %102 = vector.broadcast %cst_31 : f32 to vector<16x64xf32>
    %103 = vector.extract_strided_slice %96 {offsets = [0, 0, 0], sizes = [1, 16, 64], strides = [1, 1, 1]} : vector<16x16x64xf32> to vector<1x16x64xf32>
    %104 = vector.shape_cast %103 : vector<1x16x64xf32> to vector<16x64xf32>
    %105 = arith.mulf %104, %102 : vector<16x64xf32>
    %106 = vector.extract_strided_slice %101 {offsets = [0, 0, 0], sizes = [1, 16, 64], strides = [1, 1, 1]} : vector<16x16x64xf32> to vector<1x16x64xf32>
    %107 = vector.shape_cast %106 : vector<1x16x64xf32> to vector<16x64xf32>
    %108 = arith.addf %105, %107 : vector<16x64xf32>
    %c0_32 = arith.constant 0 : index
    %c0_33 = arith.constant 0 : index
    %c0_34 = arith.constant 0 : index
    %109 = vector.load %arg18[%c0_32, %c0_33, %c0_34] : memref<16x16x64xf32, #tpu.memory_space<vmem>>, vector<1x16x64xf32>
    %110 = vector.shape_cast %109 : vector<1x16x64xf32> to vector<16x64xf32>
    %111 = vector.shape_cast %108 : vector<16x64xf32> to vector<1x16x64xf32>
    tpu.vector_store %arg18[%c0_32, %c0_33, %c0_34], %111 {strides = array<i32>} : memref<16x16x64xf32, #tpu.memory_space<vmem>>, vector<1x16x64xf32>,
    %112 = vector.extract_strided_slice %96 {offsets = [1, 0, 0], sizes = [1, 16, 64], strides = [1, 1, 1]} : vector<16x16x64xf32> to vector<1x16x64xf32>
    %113 = vector.shape_cast %112 : vector<1x16x64xf32> to vector<16x64xf32>
    %114 = arith.mulf %113, %108 : vector<16x64xf32>
    %115 = vector.extract_strided_slice %101 {offsets = [1, 0, 0], sizes = [1, 16, 64], strides = [1, 1, 1]} : vector<16x16x64xf32> to vector<1x16x64xf32>
    %116 = vector.shape_cast %115 : vector<1x16x64xf32> to vector<16x64xf32>
    %117 = arith.addf %114, %116 : vector<16x64xf32>
    %c1 = arith.constant 1 : index
    %c0_35 = arith.constant 0 : index
    %c0_36 = arith.constant 0 : index
    %118 = vector.load %arg18[%c1, %c0_35, %c0_36] : memref<16x16x64xf32, #tpu.memory_space<vmem>>, vector<1x16x64xf32>
    %119 = vector.shape_cast %118 : vector<1x16x64xf32> to vector<16x64xf32>
    %120 = vector.shape_cast %117 : vector<16x64xf32> to vector<1x16x64xf32>
    tpu.vector_store %arg18[%c1, %c0_35, %c0_36], %120 {strides = array<i32>} : memref<16x16x64xf32, #tpu.memory_space<vmem>>, vector<1x16x64xf32>,
    %121 = vector.extract_strided_slice %96 {offsets = [2, 0, 0], sizes = [1, 16, 64], strides = [1, 1, 1]} : vector<16x16x64xf32> to vector<1x16x64xf32>
    %122 = vector.shape_cast %121 : vector<1x16x64xf32> to vector<16x64xf32>
    %123 = arith.mulf %122, %117 : vector<16x64xf32>
    %124 = vector.extract_strided_slice %101 {offsets = [2, 0, 0], sizes = [1, 16, 64], strides = [1, 1, 1]} : vector<16x16x64xf32> to vector<1x16x64xf32>
    %125 = vector.shape_cast %124 : vector<1x16x64xf32> to vector<16x64xf32>
    %126 = arith.addf %123, %125 : vector<16x64xf32>
    %c2 = arith.constant 2 : index
    %c0_37 = arith.constant 0 : index
    %c0_38 = arith.constant 0 : index
    %127 = vector.load %arg18[%c2, %c0_37, %c0_38] : memref<16x16x64xf32, #tpu.memory_space<vmem>>, vector<1x16x64xf32>
    %128 = vector.shape_cast %127 : vector<1x16x64xf32> to vector<16x64xf32>
    %129 = vector.shape_cast %126 : vector<16x64xf32> to vector<1x16x64xf32>
    tpu.vector_store %arg18[%c2, %c0_37, %c0_38], %129 {strides = array<i32>} : memref<16x16x64xf32, #tpu.memory_space<vmem>>, vector<1x16x64xf32>,
    %130 = vector.extract_strided_slice %96 {offsets = [3, 0, 0], sizes = [1, 16, 64], strides = [1, 1, 1]} : vector<16x16x64xf32> to vector<1x16x64xf32>
    %131 = vector.shape_cast %130 : vector<1x16x64xf32> to vector<16x64xf32>
    %132 = arith.mulf %131, %126 : vector<16x64xf32>
    %133 = vector.extract_strided_slice %101 {offsets = [3, 0, 0], sizes = [1, 16, 64], strides = [1, 1, 1]} : vector<16x16x64xf32> to vector<1x16x64xf32>
    %134 = vector.shape_cast %133 : vector<1x16x64xf32> to vector<16x64xf32>
    %135 = arith.addf %132, %134 : vector<16x64xf32>
    %c3 = arith.constant 3 : index
    %c0_39 = arith.constant 0 : index
    %c0_40 = arith.constant 0 : index
    %136 = vector.load %arg18[%c3, %c0_39, %c0_40] : memref<16x16x64xf32, #tpu.memory_space<vmem>>, vector<1x16x64xf32>
    %137 = vector.shape_cast %136 : vector<1x16x64xf32> to vector<16x64xf32>
    %138 = vector.shape_cast %135 : vector<16x64xf32> to vector<1x16x64xf32>
    tpu.vector_store %arg18[%c3, %c0_39, %c0_40], %138 {strides = array<i32>} : memref<16x16x64xf32, #tpu.memory_space<vmem>>, vector<1x16x64xf32>,
    %139 = vector.extract_strided_slice %96 {offsets = [4, 0, 0], sizes = [1, 16, 64], strides = [1, 1, 1]} : vector<16x16x64xf32> to vector<1x16x64xf32>
    %140 = vector.shape_cast %139 : vector<1x16x64xf32> to vector<16x64xf32>
    %141 = arith.mulf %140, %135 : vector<16x64xf32>
    %142 = vector.extract_strided_slice %101 {offsets = [4, 0, 0], sizes = [1, 16, 64], strides = [1, 1, 1]} : vector<16x16x64xf32> to vector<1x16x64xf32>
    %143 = vector.shape_cast %142 : vector<1x16x64xf32> to vector<16x64xf32>
    %144 = arith.addf %141, %143 : vector<16x64xf32>
    %c4 = arith.constant 4 : index
    %c0_41 = arith.constant 0 : index
    %c0_42 = arith.constant 0 : index
    %145 = vector.load %arg18[%c4, %c0_41, %c0_42] : memref<16x16x64xf32, #tpu.memory_space<vmem>>, vector<1x16x64xf32>
    %146 = vector.shape_cast %145 : vector<1x16x64xf32> to vector<16x64xf32>
    %147 = vector.shape_cast %144 : vector<16x64xf32> to vector<1x16x64xf32>
    tpu.vector_store %arg18[%c4, %c0_41, %c0_42], %147 {strides = array<i32>} : memref<16x16x64xf32, #tpu.memory_space<vmem>>, vector<1x16x64xf32>,
    %148 = vector.extract_strided_slice %96 {offsets = [5, 0, 0], sizes = [1, 16, 64], strides = [1, 1, 1]} : vector<16x16x64xf32> to vector<1x16x64xf32>
    %149 = vector.shape_cast %148 : vector<1x16x64xf32> to vector<16x64xf32>
    %150 = arith.mulf %149, %144 : vector<16x64xf32>
    %151 = vector.extract_strided_slice %101 {offsets = [5, 0, 0], sizes = [1, 16, 64], strides = [1, 1, 1]} : vector<16x16x64xf32> to vector<1x16x64xf32>
    %152 = vector.shape_cast %151 : vector<1x16x64xf32> to vector<16x64xf32>
    %153 = arith.addf %150, %152 : vector<16x64xf32>
    %c5 = arith.constant 5 : index
    %c0_43 = arith.constant 0 : index
    %c0_44 = arith.constant 0 : index
    %154 = vector.load %arg18[%c5, %c0_43, %c0_44] : memref<16x16x64xf32, #tpu.memory_space<vmem>>, vector<1x16x64xf32>
    %155 = vector.shape_cast %154 : vector<1x16x64xf32> to vector<16x64xf32>
    %156 = vector.shape_cast %153 : vector<16x64xf32> to vector<1x16x64xf32>
    tpu.vector_store %arg18[%c5, %c0_43, %c0_44], %156 {strides = array<i32>} : memref<16x16x64xf32, #tpu.memory_space<vmem>>, vector<1x16x64xf32>,
    %157 = vector.extract_strided_slice %96 {offsets = [6, 0, 0], sizes = [1, 16, 64], strides = [1, 1, 1]} : vector<16x16x64xf32> to vector<1x16x64xf32>
    %158 = vector.shape_cast %157 : vector<1x16x64xf32> to vector<16x64xf32>
    %159 = arith.mulf %158, %153 : vector<16x64xf32>
    %160 = vector.extract_strided_slice %101 {offsets = [6, 0, 0], sizes = [1, 16, 64], strides = [1, 1, 1]} : vector<16x16x64xf32> to vector<1x16x64xf32>
    %161 = vector.shape_cast %160 : vector<1x16x64xf32> to vector<16x64xf32>
    %162 = arith.addf %159, %161 : vector<16x64xf32>
    %c6 = arith.constant 6 : index
    %c0_45 = arith.constant 0 : index
    %c0_46 = arith.constant 0 : index
    %163 = vector.load %arg18[%c6, %c0_45, %c0_46] : memref<16x16x64xf32, #tpu.memory_space<vmem>>, vector<1x16x64xf32>
    %164 = vector.shape_cast %163 : vector<1x16x64xf32> to vector<16x64xf32>
    %165 = vector.shape_cast %162 : vector<16x64xf32> to vector<1x16x64xf32>
    tpu.vector_store %arg18[%c6, %c0_45, %c0_46], %165 {strides = array<i32>} : memref<16x16x64xf32, #tpu.memory_space<vmem>>, vector<1x16x64xf32>,
    %166 = vector.extract_strided_slice %96 {offsets = [7, 0, 0], sizes = [1, 16, 64], strides = [1, 1, 1]} : vector<16x16x64xf32> to vector<1x16x64xf32>
    %167 = vector.shape_cast %166 : vector<1x16x64xf32> to vector<16x64xf32>
    %168 = arith.mulf %167, %162 : vector<16x64xf32>
    %169 = vector.extract_strided_slice %101 {offsets = [7, 0, 0], sizes = [1, 16, 64], strides = [1, 1, 1]} : vector<16x16x64xf32> to vector<1x16x64xf32>
    %170 = vector.shape_cast %169 : vector<1x16x64xf32> to vector<16x64xf32>
    %171 = arith.addf %168, %170 : vector<16x64xf32>
    %c7 = arith.constant 7 : index
    %c0_47 = arith.constant 0 : index
    %c0_48 = arith.constant 0 : index
    %172 = vector.load %arg18[%c7, %c0_47, %c0_48] : memref<16x16x64xf32, #tpu.memory_space<vmem>>, vector<1x16x64xf32>
    %173 = vector.shape_cast %172 : vector<1x16x64xf32> to vector<16x64xf32>
    %174 = vector.shape_cast %171 : vector<16x64xf32> to vector<1x16x64xf32>
    tpu.vector_store %arg18[%c7, %c0_47, %c0_48], %174 {strides = array<i32>} : memref<16x16x64xf32, #tpu.memory_space<vmem>>, vector<1x16x64xf32>,
    %cst_49 = arith.constant 0.000000e+00 : f32
    %175 = vector.broadcast %cst_49 : f32 to vector<16x64xf32>
    %176 = vector.extract_strided_slice %96 {offsets = [8, 0, 0], sizes = [1, 16, 64], strides = [1, 1, 1]} : vector<16x16x64xf32> to vector<1x16x64xf32>
    %177 = vector.shape_cast %176 : vector<1x16x64xf32> to vector<16x64xf32>
    %178 = arith.mulf %177, %175 : vector<16x64xf32>
    %179 = vector.extract_strided_slice %101 {offsets = [8, 0, 0], sizes = [1, 16, 64], strides = [1, 1, 1]} : vector<16x16x64xf32> to vector<1x16x64xf32>
    %180 = vector.shape_cast %179 : vector<1x16x64xf32> to vector<16x64xf32>
    %181 = arith.addf %178, %180 : vector<16x64xf32>
    %c8 = arith.constant 8 : index
    %c0_50 = arith.constant 0 : index
    %c0_51 = arith.constant 0 : index
    %182 = vector.load %arg18[%c8, %c0_50, %c0_51] : memref<16x16x64xf32, #tpu.memory_space<vmem>>, vector<1x16x64xf32>
    %183 = vector.shape_cast %182 : vector<1x16x64xf32> to vector<16x64xf32>
    %184 = vector.shape_cast %181 : vector<16x64xf32> to vector<1x16x64xf32>
    tpu.vector_store %arg18[%c8, %c0_50, %c0_51], %184 {strides = array<i32>} : memref<16x16x64xf32, #tpu.memory_space<vmem>>, vector<1x16x64xf32>,
    %185 = vector.extract_strided_slice %96 {offsets = [9, 0, 0], sizes = [1, 16, 64], strides = [1, 1, 1]} : vector<16x16x64xf32> to vector<1x16x64xf32>
    %186 = vector.shape_cast %185 : vector<1x16x64xf32> to vector<16x64xf32>
    %187 = arith.mulf %186, %181 : vector<16x64xf32>
    %188 = vector.extract_strided_slice %101 {offsets = [9, 0, 0], sizes = [1, 16, 64], strides = [1, 1, 1]} : vector<16x16x64xf32> to vector<1x16x64xf32>
    %189 = vector.shape_cast %188 : vector<1x16x64xf32> to vector<16x64xf32>
    %190 = arith.addf %187, %189 : vector<16x64xf32>
    %c9 = arith.constant 9 : index
    %c0_52 = arith.constant 0 : index
    %c0_53 = arith.constant 0 : index
    %191 = vector.load %arg18[%c9, %c0_52, %c0_53] : memref<16x16x64xf32, #tpu.memory_space<vmem>>, vector<1x16x64xf32>
    %192 = vector.shape_cast %191 : vector<1x16x64xf32> to vector<16x64xf32>
    %193 = vector.shape_cast %190 : vector<16x64xf32> to vector<1x16x64xf32>
    tpu.vector_store %arg18[%c9, %c0_52, %c0_53], %193 {strides = array<i32>} : memref<16x16x64xf32, #tpu.memory_space<vmem>>, vector<1x16x64xf32>,
    %194 = vector.extract_strided_slice %96 {offsets = [10, 0, 0], sizes = [1, 16, 64], strides = [1, 1, 1]} : vector<16x16x64xf32> to vector<1x16x64xf32>
    %195 = vector.shape_cast %194 : vector<1x16x64xf32> to vector<16x64xf32>
    %196 = arith.mulf %195, %190 : vector<16x64xf32>
    %197 = vector.extract_strided_slice %101 {offsets = [10, 0, 0], sizes = [1, 16, 64], strides = [1, 1, 1]} : vector<16x16x64xf32> to vector<1x16x64xf32>
    %198 = vector.shape_cast %197 : vector<1x16x64xf32> to vector<16x64xf32>
    %199 = arith.addf %196, %198 : vector<16x64xf32>
    %c10 = arith.constant 10 : index
    %c0_54 = arith.constant 0 : index
    %c0_55 = arith.constant 0 : index
    %200 = vector.load %arg18[%c10, %c0_54, %c0_55] : memref<16x16x64xf32, #tpu.memory_space<vmem>>, vector<1x16x64xf32>
    %201 = vector.shape_cast %200 : vector<1x16x64xf32> to vector<16x64xf32>
    %202 = vector.shape_cast %199 : vector<16x64xf32> to vector<1x16x64xf32>
    tpu.vector_store %arg18[%c10, %c0_54, %c0_55], %202 {strides = array<i32>} : memref<16x16x64xf32, #tpu.memory_space<vmem>>, vector<1x16x64xf32>,
    %203 = vector.extract_strided_slice %96 {offsets = [11, 0, 0], sizes = [1, 16, 64], strides = [1, 1, 1]} : vector<16x16x64xf32> to vector<1x16x64xf32>
    %204 = vector.shape_cast %203 : vector<1x16x64xf32> to vector<16x64xf32>
    %205 = arith.mulf %204, %199 : vector<16x64xf32>
    %206 = vector.extract_strided_slice %101 {offsets = [11, 0, 0], sizes = [1, 16, 64], strides = [1, 1, 1]} : vector<16x16x64xf32> to vector<1x16x64xf32>
    %207 = vector.shape_cast %206 : vector<1x16x64xf32> to vector<16x64xf32>
    %208 = arith.addf %205, %207 : vector<16x64xf32>
    %c11 = arith.constant 11 : index
    %c0_56 = arith.constant 0 : index
    %c0_57 = arith.constant 0 : index
    %209 = vector.load %arg18[%c11, %c0_56, %c0_57] : memref<16x16x64xf32, #tpu.memory_space<vmem>>, vector<1x16x64xf32>
    %210 = vector.shape_cast %209 : vector<1x16x64xf32> to vector<16x64xf32>
    %211 = vector.shape_cast %208 : vector<16x64xf32> to vector<1x16x64xf32>
    tpu.vector_store %arg18[%c11, %c0_56, %c0_57], %211 {strides = array<i32>} : memref<16x16x64xf32, #tpu.memory_space<vmem>>, vector<1x16x64xf32>,
    %212 = vector.extract_strided_slice %96 {offsets = [12, 0, 0], sizes = [1, 16, 64], strides = [1, 1, 1]} : vector<16x16x64xf32> to vector<1x16x64xf32>
    %213 = vector.shape_cast %212 : vector<1x16x64xf32> to vector<16x64xf32>
    %214 = arith.mulf %213, %208 : vector<16x64xf32>
    %215 = vector.extract_strided_slice %101 {offsets = [12, 0, 0], sizes = [1, 16, 64], strides = [1, 1, 1]} : vector<16x16x64xf32> to vector<1x16x64xf32>
    %216 = vector.shape_cast %215 : vector<1x16x64xf32> to vector<16x64xf32>
    %217 = arith.addf %214, %216 : vector<16x64xf32>
    %c12 = arith.constant 12 : index
    %c0_58 = arith.constant 0 : index
    %c0_59 = arith.constant 0 : index
    %218 = vector.load %arg18[%c12, %c0_58, %c0_59] : memref<16x16x64xf32, #tpu.memory_space<vmem>>, vector<1x16x64xf32>
    %219 = vector.shape_cast %218 : vector<1x16x64xf32> to vector<16x64xf32>
    %220 = vector.shape_cast %217 : vector<16x64xf32> to vector<1x16x64xf32>
    tpu.vector_store %arg18[%c12, %c0_58, %c0_59], %220 {strides = array<i32>} : memref<16x16x64xf32, #tpu.memory_space<vmem>>, vector<1x16x64xf32>,
    %221 = vector.extract_strided_slice %96 {offsets = [13, 0, 0], sizes = [1, 16, 64], strides = [1, 1, 1]} : vector<16x16x64xf32> to vector<1x16x64xf32>
    %222 = vector.shape_cast %221 : vector<1x16x64xf32> to vector<16x64xf32>
    %223 = arith.mulf %222, %217 : vector<16x64xf32>
    %224 = vector.extract_strided_slice %101 {offsets = [13, 0, 0], sizes = [1, 16, 64], strides = [1, 1, 1]} : vector<16x16x64xf32> to vector<1x16x64xf32>
    %225 = vector.shape_cast %224 : vector<1x16x64xf32> to vector<16x64xf32>
    %226 = arith.addf %223, %225 : vector<16x64xf32>
    %c13 = arith.constant 13 : index
    %c0_60 = arith.constant 0 : index
    %c0_61 = arith.constant 0 : index
    %227 = vector.load %arg18[%c13, %c0_60, %c0_61] : memref<16x16x64xf32, #tpu.memory_space<vmem>>, vector<1x16x64xf32>
    %228 = vector.shape_cast %227 : vector<1x16x64xf32> to vector<16x64xf32>
    %229 = vector.shape_cast %226 : vector<16x64xf32> to vector<1x16x64xf32>
    tpu.vector_store %arg18[%c13, %c0_60, %c0_61], %229 {strides = array<i32>} : memref<16x16x64xf32, #tpu.memory_space<vmem>>, vector<1x16x64xf32>,
    %230 = vector.extract_strided_slice %96 {offsets = [14, 0, 0], sizes = [1, 16, 64], strides = [1, 1, 1]} : vector<16x16x64xf32> to vector<1x16x64xf32>
    %231 = vector.shape_cast %230 : vector<1x16x64xf32> to vector<16x64xf32>
    %232 = arith.mulf %231, %226 : vector<16x64xf32>
    %233 = vector.extract_strided_slice %101 {offsets = [14, 0, 0], sizes = [1, 16, 64], strides = [1, 1, 1]} : vector<16x16x64xf32> to vector<1x16x64xf32>
    %234 = vector.shape_cast %233 : vector<1x16x64xf32> to vector<16x64xf32>
    %235 = arith.addf %232, %234 : vector<16x64xf32>
    %c14 = arith.constant 14 : index
    %c0_62 = arith.constant 0 : index
    %c0_63 = arith.constant 0 : index
    %236 = vector.load %arg18[%c14, %c0_62, %c0_63] : memref<16x16x64xf32, #tpu.memory_space<vmem>>, vector<1x16x64xf32>
    %237 = vector.shape_cast %236 : vector<1x16x64xf32> to vector<16x64xf32>
    %238 = vector.shape_cast %235 : vector<16x64xf32> to vector<1x16x64xf32>
    tpu.vector_store %arg18[%c14, %c0_62, %c0_63], %238 {strides = array<i32>} : memref<16x16x64xf32, #tpu.memory_space<vmem>>, vector<1x16x64xf32>,
    %239 = vector.extract_strided_slice %96 {offsets = [15, 0, 0], sizes = [1, 16, 64], strides = [1, 1, 1]} : vector<16x16x64xf32> to vector<1x16x64xf32>
    %240 = vector.shape_cast %239 : vector<1x16x64xf32> to vector<16x64xf32>
    %241 = arith.mulf %240, %235 : vector<16x64xf32>
    %242 = vector.extract_strided_slice %101 {offsets = [15, 0, 0], sizes = [1, 16, 64], strides = [1, 1, 1]} : vector<16x16x64xf32> to vector<1x16x64xf32>
    %243 = vector.shape_cast %242 : vector<1x16x64xf32> to vector<16x64xf32>
    %244 = arith.addf %241, %243 : vector<16x64xf32>
    %c15 = arith.constant 15 : index
    %c0_64 = arith.constant 0 : index
    %c0_65 = arith.constant 0 : index
    %245 = vector.load %arg18[%c15, %c0_64, %c0_65] : memref<16x16x64xf32, #tpu.memory_space<vmem>>, vector<1x16x64xf32>
    %246 = vector.shape_cast %245 : vector<1x16x64xf32> to vector<16x64xf32>
    %247 = vector.shape_cast %244 : vector<16x64xf32> to vector<1x16x64xf32>
    tpu.vector_store %arg18[%c15, %c0_64, %c0_65], %247 {strides = array<i32>} : memref<16x16x64xf32, #tpu.memory_space<vmem>>, vector<1x16x64xf32>,
    %248 = vector.shape_cast %85 : vector<16x16xf32> to vector<16x16x1xf32>
    %c0_66 = arith.constant 0 : index
    %c0_67 = arith.constant 0 : index
    %c0_68 = arith.constant 0 : index
    %249 = vector.load %arg18[%c0_66, %c0_67, %c0_68] : memref<16x16x64xf32, #tpu.memory_space<vmem>>, vector<16x16x64xf32>
    %250 = vector.broadcast %248 : vector<16x16x1xf32> to vector<16x16x64xf32>
    %251 = arith.mulf %250, %249 : vector<16x16x64xf32>
    %cst_69 = arith.constant dense<0.000000e+00> : vector<16x64xf32>
    %252 = vector.multi_reduction <add>, %251, %cst_69 [1] : vector<16x16x64xf32> to vector<16x64xf32>
    %c0_70 = arith.constant 0 : index
    %c0_71 = arith.constant 0 : index
    %253 = vector.load %arg7[%c0_70, %c0_71] : memref<1x64xf32, #tpu.memory_space<vmem>>, vector<1x64xf32>
    %254 = vector.broadcast %253 : vector<1x64xf32> to vector<16x64xf32>
    %255 = arith.mulf %63, %254 : vector<16x64xf32>
    %256 = arith.addf %252, %255 : vector<16x64xf32>
    %cst_72 = arith.constant 0.000000e+00 : f32
    %257 = vector.broadcast %cst_72 : f32 to vector<16x64xf32>
    %258 = arith.subf %257, %5 : vector<16x64xf32>
    %259 = math.exp %258 : vector<16x64xf32>
    %cst_73 = arith.constant 1.000000e+00 : f32
    %260 = vector.broadcast %cst_73 : f32 to vector<16x64xf32>
    %261 = arith.addf %260, %259 : vector<16x64xf32>
    %262 = tpu.reciprocal %261 {approx = true} : vector<16x64xf32> -> vector<16x64xf32>
    %263 = arith.mulf %5, %262 : vector<16x64xf32>
    %264 = arith.mulf %256, %263 : vector<16x64xf32>
    %265 = arith.truncf %264 : vector<16x64xf32> to vector<16x64xbf16>
    %c0_74 = arith.constant 0 : index
    %c0_75 = arith.constant 0 : index
    %266 = vector.load %arg8[%c0_74, %c0_75] : memref<64x32xbf16, #tpu.memory_space<vmem>>, vector<64x32xbf16>
    %cst_76 = arith.constant dense<0.000000e+00> : vector<16x32xf32>
    %267 = tpu.matmul %265, %266, %cst_76 {dimension_numbers = #tpu.dot_dimension_numbers<[1], [0], [0], [1], [0, 0, 1, 1], [], []>} : vector<16x64xbf16>, vector<64x32xbf16>, vector<16x32xf32> -> vector<16x32xf32>
    %268 = arith.addf %0, %267 : vector<16x32xf32>
    %c0_77 = arith.constant 0 : index
    %c0_78 = arith.constant 0 : index
    %269 = vector.load %arg9[%c0_77, %c0_78] : memref<1x32xf32, #tpu.memory_space<vmem>>, vector<1x32xf32>
    %c0_79 = arith.constant 0 : index
    %c0_80 = arith.constant 0 : index
    %270 = vector.load %arg10[%c0_79, %c0_80] : memref<1x32xf32, #tpu.memory_space<vmem>>, vector<1x32xf32>
    %cst_81 = arith.constant dense<0.000000e+00> : vector<16xf32>
    %271 = vector.multi_reduction <add>, %268, %cst_81 [1] : vector<16x32xf32> to vector<16xf32>
    %272 = vector.shape_cast %271 : vector<16xf32> to vector<16x1xf32>
    %cst_82 = arith.constant 3.200000e+01 : f32
    %273 = vector.broadcast %cst_82 : f32 to vector<16x1xf32>
    %274 = arith.divf %272, %273 : vector<16x1xf32>
    %275 = vector.broadcast %274 : vector<16x1xf32> to vector<16x32xf32>
    %276 = arith.subf %268, %275 : vector<16x32xf32>
    %277 = arith.mulf %276, %276 : vector<16x32xf32>
    %cst_83 = arith.constant dense<0.000000e+00> : vector<16xf32>
    %278 = vector.multi_reduction <add>, %277, %cst_83 [1] : vector<16x32xf32> to vector<16xf32>
    %279 = vector.shape_cast %278 : vector<16xf32> to vector<16x1xf32>
    %cst_84 = arith.constant 3.200000e+01 : f32
    %280 = vector.broadcast %cst_84 : f32 to vector<16x1xf32>
    %281 = arith.divf %279, %280 : vector<16x1xf32>
    %cst_85 = arith.constant 9.99999974E-6 : f32
    %282 = vector.broadcast %cst_85 : f32 to vector<16x1xf32>
    %283 = arith.addf %281, %282 : vector<16x1xf32>
    %284 = math.rsqrt %283 : vector<16x1xf32>
    %285 = vector.broadcast %284 : vector<16x1xf32> to vector<16x32xf32>
    %286 = arith.mulf %276, %285 : vector<16x32xf32>
    %287 = vector.broadcast %269 : vector<1x32xf32> to vector<16x32xf32>
    %288 = arith.mulf %286, %287 : vector<16x32xf32>
    %289 = vector.broadcast %270 : vector<1x32xf32> to vector<16x32xf32>
    %290 = arith.addf %288, %289 : vector<16x32xf32>
    %291 = arith.truncf %290 : vector<16x32xf32> to vector<16x32xbf16>
    %c0_86 = arith.constant 0 : index
    %c0_87 = arith.constant 0 : index
    %292 = vector.load %arg11[%c0_86, %c0_87] : memref<32x64xbf16, #tpu.memory_space<vmem>>, vector<32x64xbf16>
    %cst_88 = arith.constant dense<0.000000e+00> : vector<16x64xf32>
    %293 = tpu.matmul %291, %292, %cst_88 {dimension_numbers = #tpu.dot_dimension_numbers<[1], [0], [0], [1], [0, 0, 1, 1], [], []>} : vector<16x32xbf16>, vector<32x64xbf16>, vector<16x64xf32> -> vector<16x64xf32>
    %c0_89 = arith.constant 0 : index
    %c0_90 = arith.constant 0 : index
    %294 = vector.load %arg12[%c0_89, %c0_90] : memref<1x64xf32, #tpu.memory_space<vmem>>, vector<1x64xf32>
    %295 = vector.broadcast %294 : vector<1x64xf32> to vector<16x64xf32>
    %296 = arith.addf %293, %295 : vector<16x64xf32>
    %cst_91 = arith.constant 5.000000e-01 : f32
    %297 = vector.broadcast %cst_91 : f32 to vector<16x64xf32>
    %298 = arith.mulf %297, %296 : vector<16x64xf32>
    %cst_92 = arith.constant 0.707106769 : f32
    %299 = vector.broadcast %cst_92 : f32 to vector<16x64xf32>
    %300 = arith.mulf %296, %299 : vector<16x64xf32>
    %cst_93 = arith.constant 0.000000e+00 : f32
    %301 = vector.broadcast %cst_93 : f32 to vector<16x64xf32>
    %302 = arith.cmpf oge, %300, %301 : vector<16x64xf32>
    %cst_94 = arith.constant 1.000000e+00 : f32
    %cst_95 = arith.constant -1.000000e+00 : f32
    %303 = vector.broadcast %cst_94 : f32 to vector<16x64xf32>
    %304 = vector.broadcast %cst_95 : f32 to vector<16x64xf32>
    %305 = arith.select %302, %303, %304 : vector<16x64xi1>, vector<16x64xf32>
    %306 = math.absf %300 : vector<16x64xf32>
    %cst_96 = arith.constant 0.327591091 : f32
    %307 = vector.broadcast %cst_96 : f32 to vector<16x64xf32>
    %308 = arith.mulf %307, %306 : vector<16x64xf32>
    %cst_97 = arith.constant 1.000000e+00 : f32
    %309 = vector.broadcast %cst_97 : f32 to vector<16x64xf32>
    %310 = arith.addf %309, %308 : vector<16x64xf32>
    %cst_98 = arith.constant 1.000000e+00 : f32
    %311 = vector.broadcast %cst_98 : f32 to vector<16x64xf32>
    %312 = arith.divf %311, %310 : vector<16x64xf32>
    %cst_99 = arith.constant 1.06140542 : f32
    %313 = vector.broadcast %cst_99 : f32 to vector<16x64xf32>
    %314 = arith.mulf %313, %312 : vector<16x64xf32>
    %cst_100 = arith.constant -1.45315206 : f32
    %315 = vector.broadcast %cst_100 : f32 to vector<16x64xf32>
    %316 = arith.addf %314, %315 : vector<16x64xf32>
    %317 = arith.mulf %316, %312 : vector<16x64xf32>
    %cst_101 = arith.constant 1.42141378 : f32
    %318 = vector.broadcast %cst_101 : f32 to vector<16x64xf32>
    %319 = arith.addf %317, %318 : vector<16x64xf32>
    %320 = arith.mulf %319, %312 : vector<16x64xf32>
    %cst_102 = arith.constant -0.284496725 : f32
    %321 = vector.broadcast %cst_102 : f32 to vector<16x64xf32>
    %322 = arith.addf %320, %321 : vector<16x64xf32>
    %323 = arith.mulf %322, %312 : vector<16x64xf32>
    %cst_103 = arith.constant 0.254829586 : f32
    %324 = vector.broadcast %cst_103 : f32 to vector<16x64xf32>
    %325 = arith.addf %323, %324 : vector<16x64xf32>
    %326 = arith.mulf %325, %312 : vector<16x64xf32>
    %cst_104 = arith.constant 0.000000e+00 : f32
    %327 = vector.broadcast %cst_104 : f32 to vector<16x64xf32>
    %328 = arith.subf %327, %306 : vector<16x64xf32>
    %329 = arith.mulf %328, %306 : vector<16x64xf32>
    %330 = math.exp %329 : vector<16x64xf32>
    %331 = arith.mulf %326, %330 : vector<16x64xf32>
    %cst_105 = arith.constant 1.000000e+00 : f32
    %332 = vector.broadcast %cst_105 : f32 to vector<16x64xf32>
    %333 = arith.subf %332, %331 : vector<16x64xf32>
    %334 = arith.mulf %305, %333 : vector<16x64xf32>
    %cst_106 = arith.constant 1.000000e+00 : f32
    %335 = vector.broadcast %cst_106 : f32 to vector<16x64xf32>
    %336 = arith.addf %335, %334 : vector<16x64xf32>
    %337 = arith.mulf %298, %336 : vector<16x64xf32>
    %338 = arith.truncf %337 : vector<16x64xf32> to vector<16x64xbf16>
    %c0_107 = arith.constant 0 : index
    %c0_108 = arith.constant 0 : index
    %339 = vector.load %arg13[%c0_107, %c0_108] : memref<64x32xbf16, #tpu.memory_space<vmem>>, vector<64x32xbf16>
    %cst_109 = arith.constant dense<0.000000e+00> : vector<16x32xf32>
    %340 = tpu.matmul %338, %339, %cst_109 {dimension_numbers = #tpu.dot_dimension_numbers<[1], [0], [0], [1], [0, 0, 1, 1], [], []>} : vector<16x64xbf16>, vector<64x32xbf16>, vector<16x32xf32> -> vector<16x32xf32>
    %c0_110 = arith.constant 0 : index
    %c0_111 = arith.constant 0 : index
    %341 = vector.load %arg14[%c0_110, %c0_111] : memref<1x32xf32, #tpu.memory_space<vmem>>, vector<1x32xf32>
    %342 = vector.broadcast %341 : vector<1x32xf32> to vector<16x32xf32>
    %343 = arith.addf %340, %342 : vector<16x32xf32>
    %cst_112 = arith.constant 5.000000e-01 : f32
    %344 = vector.broadcast %cst_112 : f32 to vector<16x32xf32>
    %345 = arith.mulf %344, %343 : vector<16x32xf32>
    %cst_113 = arith.constant 0.707106769 : f32
    %346 = vector.broadcast %cst_113 : f32 to vector<16x32xf32>
    %347 = arith.mulf %343, %346 : vector<16x32xf32>
    %cst_114 = arith.constant 0.000000e+00 : f32
    %348 = vector.broadcast %cst_114 : f32 to vector<16x32xf32>
    %349 = arith.cmpf oge, %347, %348 : vector<16x32xf32>
    %cst_115 = arith.constant 1.000000e+00 : f32
    %cst_116 = arith.constant -1.000000e+00 : f32
    %350 = vector.broadcast %cst_115 : f32 to vector<16x32xf32>
    %351 = vector.broadcast %cst_116 : f32 to vector<16x32xf32>
    %352 = arith.select %349, %350, %351 : vector<16x32xi1>, vector<16x32xf32>
    %353 = math.absf %347 : vector<16x32xf32>
    %cst_117 = arith.constant 0.327591091 : f32
    %354 = vector.broadcast %cst_117 : f32 to vector<16x32xf32>
    %355 = arith.mulf %354, %353 : vector<16x32xf32>
    %cst_118 = arith.constant 1.000000e+00 : f32
    %356 = vector.broadcast %cst_118 : f32 to vector<16x32xf32>
    %357 = arith.addf %356, %355 : vector<16x32xf32>
    %cst_119 = arith.constant 1.000000e+00 : f32
    %358 = vector.broadcast %cst_119 : f32 to vector<16x32xf32>
    %359 = arith.divf %358, %357 : vector<16x32xf32>
    %cst_120 = arith.constant 1.06140542 : f32
    %360 = vector.broadcast %cst_120 : f32 to vector<16x32xf32>
    %361 = arith.mulf %360, %359 : vector<16x32xf32>
    %cst_121 = arith.constant -1.45315206 : f32
    %362 = vector.broadcast %cst_121 : f32 to vector<16x32xf32>
    %363 = arith.addf %361, %362 : vector<16x32xf32>
    %364 = arith.mulf %363, %359 : vector<16x32xf32>
    %cst_122 = arith.constant 1.42141378 : f32
    %365 = vector.broadcast %cst_122 : f32 to vector<16x32xf32>
    %366 = arith.addf %364, %365 : vector<16x32xf32>
    %367 = arith.mulf %366, %359 : vector<16x32xf32>
    %cst_123 = arith.constant -0.284496725 : f32
    %368 = vector.broadcast %cst_123 : f32 to vector<16x32xf32>
    %369 = arith.addf %367, %368 : vector<16x32xf32>
    %370 = arith.mulf %369, %359 : vector<16x32xf32>
    %cst_124 = arith.constant 0.254829586 : f32
    %371 = vector.broadcast %cst_124 : f32 to vector<16x32xf32>
    %372 = arith.addf %370, %371 : vector<16x32xf32>
    %373 = arith.mulf %372, %359 : vector<16x32xf32>
    %cst_125 = arith.constant 0.000000e+00 : f32
    %374 = vector.broadcast %cst_125 : f32 to vector<16x32xf32>
    %375 = arith.subf %374, %353 : vector<16x32xf32>
    %376 = arith.mulf %375, %353 : vector<16x32xf32>
    %377 = math.exp %376 : vector<16x32xf32>
    %378 = arith.mulf %373, %377 : vector<16x32xf32>
    %cst_126 = arith.constant 1.000000e+00 : f32
    %379 = vector.broadcast %cst_126 : f32 to vector<16x32xf32>
    %380 = arith.subf %379, %378 : vector<16x32xf32>
    %381 = arith.mulf %352, %380 : vector<16x32xf32>
    %cst_127 = arith.constant 1.000000e+00 : f32
    %382 = vector.broadcast %cst_127 : f32 to vector<16x32xf32>
    %383 = arith.addf %382, %381 : vector<16x32xf32>
    %384 = arith.mulf %345, %383 : vector<16x32xf32>
    %385 = arith.addf %290, %384 : vector<16x32xf32>
    %c0_128 = arith.constant 0 : index
    %c0_129 = arith.constant 0 : index
    %386 = vector.load %arg15[%c0_128, %c0_129] : memref<1x32xf32, #tpu.memory_space<vmem>>, vector<1x32xf32>
    %c0_130 = arith.constant 0 : index
    %c0_131 = arith.constant 0 : index
    %387 = vector.load %arg16[%c0_130, %c0_131] : memref<1x32xf32, #tpu.memory_space<vmem>>, vector<1x32xf32>
    %cst_132 = arith.constant dense<0.000000e+00> : vector<16xf32>
    %388 = vector.multi_reduction <add>, %385, %cst_132 [1] : vector<16x32xf32> to vector<16xf32>
    %389 = vector.shape_cast %388 : vector<16xf32> to vector<16x1xf32>
    %cst_133 = arith.constant 3.200000e+01 : f32
    %390 = vector.broadcast %cst_133 : f32 to vector<16x1xf32>
    %391 = arith.divf %389, %390 : vector<16x1xf32>
    %392 = vector.broadcast %391 : vector<16x1xf32> to vector<16x32xf32>
    %393 = arith.subf %385, %392 : vector<16x32xf32>
    %394 = arith.mulf %393, %393 : vector<16x32xf32>
    %cst_134 = arith.constant dense<0.000000e+00> : vector<16xf32>
    %395 = vector.multi_reduction <add>, %394, %cst_134 [1] : vector<16x32xf32> to vector<16xf32>
    %396 = vector.shape_cast %395 : vector<16xf32> to vector<16x1xf32>
    %cst_135 = arith.constant 3.200000e+01 : f32
    %397 = vector.broadcast %cst_135 : f32 to vector<16x1xf32>
    %398 = arith.divf %396, %397 : vector<16x1xf32>
    %cst_136 = arith.constant 9.99999974E-6 : f32
    %399 = vector.broadcast %cst_136 : f32 to vector<16x1xf32>
    %400 = arith.addf %398, %399 : vector<16x1xf32>
    %401 = math.rsqrt %400 : vector<16x1xf32>
    %402 = vector.broadcast %401 : vector<16x1xf32> to vector<16x32xf32>
    %403 = arith.mulf %393, %402 : vector<16x32xf32>
    %404 = vector.broadcast %386 : vector<1x32xf32> to vector<16x32xf32>
    %405 = arith.mulf %403, %404 : vector<16x32xf32>
    %406 = vector.broadcast %387 : vector<1x32xf32> to vector<16x32xf32>
    %407 = arith.addf %405, %406 : vector<16x32xf32>
    %c0_137 = arith.constant 0 : index
    %c0_138 = arith.constant 0 : index
    %408 = vector.load %arg17[%c0_137, %c0_138] : memref<16x32xf32, #tpu.memory_space<vmem>>, vector<16x32xf32>
    tpu.vector_store %arg17[%c0_137, %c0_138], %407 {strides = array<i32>} : memref<16x32xf32, #tpu.memory_space<vmem>>, vector<16x32xf32>,
    return
  }
}

</mosaic_0001>

<llo_original>
// kernel: mamba_block.1
$region0: #{mamba_block.1}
  #allocation0 [shape = 'u32[]', space=smem, size = 0x4, offset = 0x4, fixed_abs, tag = 'smem constant byte address 0x4 - core index']
  #allocation1 [shape = 'u32[144,128]{1,0:T(1,128)}', space=vmem, size = 0x12000, scoped, tag = 'internal scratch']
  #allocation2 [shape = 'f32[16,16,64]{2,1,0:T(8,128)}', space=vmem, size = 0x20000, scoped, tag = 'scratch operand']
  %s0 = inlined_call_operand.vmem [shape: f32[16,32], index: 0, kind: input, shape index: {}]
  %s1 = inlined_call_operand.vmem [shape: bf16[32,128], index: 1, kind: input, shape index: {}]
  %s2 = inlined_call_operand.hbm [shape: f32[4,64], index: 2, kind: input, shape index: {}]
  %s3 = inlined_call_operand.vmem [shape: f32[1,64], index: 3, kind: input, shape index: {}]
  %s4 = inlined_call_operand.vmem [shape: bf16[64,128], index: 4, kind: input, shape index: {}]
  %s5 = inlined_call_operand.vmem [shape: f32[1,64], index: 5, kind: input, shape index: {}]
  %s6 = inlined_call_operand.vmem [shape: f32[16,64], index: 6, kind: input, shape index: {}]
  %s7 = inlined_call_operand.hbm [shape: f32[1,64], index: 7, kind: input, shape index: {}]
  %s8 = inlined_call_operand.vmem [shape: bf16[64,32], index: 8, kind: input, shape index: {}]
  %s9 = inlined_call_operand.vmem [shape: f32[1,32], index: 9, kind: input, shape index: {}]
  %s10 = inlined_call_operand.vmem [shape: f32[1,32], index: 10, kind: input, shape index: {}]
  %s11 = inlined_call_operand.vmem [shape: bf16[32,64], index: 11, kind: input, shape index: {}]
  %s12 = inlined_call_operand.hbm [shape: f32[1,64], index: 12, kind: input, shape index: {}]
  %s13 = inlined_call_operand.vmem [shape: bf16[64,32], index: 13, kind: input, shape index: {}]
  %s14 = inlined_call_operand.hbm [shape: f32[1,32], index: 14, kind: input, shape index: {}]
  %s15 = inlined_call_operand.vmem [shape: f32[1,32], index: 15, kind: input, shape index: {}]
  %s16 = inlined_call_operand.vmem [shape: f32[1,32], index: 16, kind: input, shape index: {}]
  %s17 = inlined_call_operand.hbm [shape: f32[16,32], index: 17, kind: output, shape index: {}]
  %s18 = sld [smem:[#allocation0]]
  $region94: #{mamba_block.1} parent=0
    _
  %s20 = ssub.s32 1, %s18
  %s21 = scalar_select 0, %s20, %s18
  $region1: #{mamba_block.1} parent=0
    #allocation3 [shape = 'u8[2048]{0}', space=vmem, size = 0x800, scoped, tag = 'input window, operand 2, single buffered']
    #allocation4 [shape = 's32[1]{0}', space=sflag, size = 0x4, scoped, tag = 'scoped memory for mamba_block.1']
    #allocation5 [shape = 's32[1]{0}', space=sflag, size = 0x4, scoped, tag = 'scoped memory for mamba_block.1']
    #allocation6 [shape = 'u8[512]{0}', space=vmem, size = 0x400, scoped, tag = 'input window, operand 7, single buffered']
    #allocation7 [shape = 's32[1]{0}', space=sflag, size = 0x4, scoped, tag = 'scoped memory for mamba_block.1']
    #allocation8 [shape = 'u8[512]{0}', space=vmem, size = 0x400, scoped, tag = 'input window, operand 12, single buffered']
    #allocation9 [shape = 'u8[512]{0}', space=vmem, size = 0x400, scoped, tag = 'input window, operand 14, single buffered']
    #allocation10 [shape = 's32[1]{0}', space=sflag, size = 0x4, scoped, tag = 'scoped memory for mamba_block.1']
    #allocation11 [shape = 'u8[8192]{0}', space=vmem, size = 0x2000, scoped, tag = 'output window, operand 0, single buffered']
    %22 = vsyncpa [#allocation4], 0
    %23 = vsyncpa [#allocation7], 0
    %24 = vsyncpa [#allocation10], 0
    %25 = vsyncpa [#allocation5], 0
    // Predicated region
    $region2: #{mamba_block.1} parent=1 // pred_check
      _
    $region3: #{mamba_block.1} parent=1 // pred_check_branch
      %27 = sbr.rel (0) target = $region5
    $region4: #{mamba_block.1} parent=1 // pred_region
      _
    $region5: #{mamba_block.1} parent=1 // pred_fallthru
      _
    // Predicated region
    $region6: #{mamba_block.1} parent=1 // pred_check
      _
    $region7: #{mamba_block.1} parent=1 // pred_check_branch
      %29 = sbr.rel (0) target = $region9
    $region8: #{mamba_block.1} parent=1 // pred_region
      _
    $region9: #{mamba_block.1} parent=1 // pred_fallthru
      _
    // Predicated region
    $region10: #{mamba_block.1} parent=1 // pred_check
      _
    $region11: #{mamba_block.1} parent=1 // pred_check_branch
      %31 = sbr.rel (0) target = $region13
    $region12: #{mamba_block.1} parent=1 // pred_region
      %s33 = ssub.s32 64, 64
      %34 = vsyncadd [#allocation4], %s33
      %s36 = sshll.u32 [#allocation3], 4
      %s37 = int_to_ptr.vmem [resolvable:$true] %s36
      %39 = dma.hbm_to_vmem [thread:$0]  %s2, 64, %s37, [#allocation4]
    $region13: #{mamba_block.1} parent=1 // pred_fallthru
      _
    // Predicated region
    $region14: #{mamba_block.1} parent=1 // pred_check
      _
    $region15: #{mamba_block.1} parent=1 // pred_check_branch
      %41 = sbr.rel (0) target = $region17
    $region16: #{mamba_block.1} parent=1 // pred_region
      _
    $region17: #{mamba_block.1} parent=1 // pred_fallthru
      _
    // Predicated region
    $region18: #{mamba_block.1} parent=1 // pred_check
      _
    $region19: #{mamba_block.1} parent=1 // pred_check_branch
      %43 = sbr.rel (0) target = $region21
    $region20: #{mamba_block.1} parent=1 // pred_region
      _
    $region21: #{mamba_block.1} parent=1 // pred_fallthru
      _
    // Predicated region
    $region22: #{mamba_block.1} parent=1 // pred_check
      _
    $region23: #{mamba_block.1} parent=1 // pred_check_branch
      %45 = sbr.rel (0) target = $region25
    $region24: #{mamba_block.1} parent=1 // pred_region
      _
    $region25: #{mamba_block.1} parent=1 // pred_fallthru
      _
    // Predicated region
    $region26: #{mamba_block.1} parent=1 // pred_check
      _
    $region27: #{mamba_block.1} parent=1 // pred_check_branch
      %47 = sbr.rel (0) target = $region29
    $region28: #{mamba_block.1} parent=1 // pred_region
      _
    $region29: #{mamba_block.1} parent=1 // pred_fallthru
      _
    // Predicated region
    $region30: #{mamba_block.1} parent=1 // pred_check
      _
    $region31: #{mamba_block.1} parent=1 // pred_check_branch
      %49 = sbr.rel (0) target = $region33
    $region32: #{mamba_block.1} parent=1 // pred_region
      %s51 = ssub.s32 16, 16
      %52 = vsyncadd [#allocation7], %s51
      %s54 = sshll.u32 [#allocation6], 4
      %s55 = int_to_ptr.vmem [resolvable:$true] %s54
      %57 = dma.hbm_to_vmem [thread:$0]  %s7, 16, %s55, [#allocation7]
    $region33: #{mamba_block.1} parent=1 // pred_fallthru
      _
    // Predicated region
    $region34: #{mamba_block.1} parent=1 // pred_check
      _
    $region35: #{mamba_block.1} parent=1 // pred_check_branch
      %59 = sbr.rel (0) target = $region37
    $region36: #{mamba_block.1} parent=1 // pred_region
      _
    $region37: #{mamba_block.1} parent=1 // pred_fallthru
      _
    // Predicated region
    $region38: #{mamba_block.1} parent=1 // pred_check
      _
    $region39: #{mamba_block.1} parent=1 // pred_check_branch
      %61 = sbr.rel (0) target = $region41
    $region40: #{mamba_block.1} parent=1 // pred_region
      _
    $region41: #{mamba_block.1} parent=1 // pred_fallthru
      _
    // Predicated region
    $region42: #{mamba_block.1} parent=1 // pred_check
      _
    $region43: #{mamba_block.1} parent=1 // pred_check_branch
      %63 = sbr.rel (0) target = $region45
    $region44: #{mamba_block.1} parent=1 // pred_region
      _
    $region45: #{mamba_block.1} parent=1 // pred_fallthru
      _
    // Predicated region
    $region46: #{mamba_block.1} parent=1 // pred_check
      _
    $region47: #{mamba_block.1} parent=1 // pred_check_branch
      %65 = sbr.rel (0) target = $region49
    $region48: #{mamba_block.1} parent=1 // pred_region
      _
    $region49: #{mamba_block.1} parent=1 // pred_fallthru
      _
    // Predicated region
    $region50: #{mamba_block.1} parent=1 // pred_check
      _
    $region51: #{mamba_block.1} parent=1 // pred_check_branch
      %67 = sbr.rel (0) target = $region53
    $region52: #{mamba_block.1} parent=1 // pred_region
      %s69 = ssub.s32 16, 16
      %70 = vsyncadd [#allocation7], %s69
      %s72 = sshll.u32 [#allocation8], 4
      %s73 = int_to_ptr.vmem [resolvable:$true] %s72
      %75 = dma.hbm_to_vmem [thread:$0]  %s12, 16, %s73, [#allocation7]
    $region53: #{mamba_block.1} parent=1 // pred_fallthru
      _
    // Predicated region
    $region54: #{mamba_block.1} parent=1 // pred_check
      _
    $region55: #{mamba_block.1} parent=1 // pred_check_branch
      %77 = sbr.rel (0) target = $region57
    $region56: #{mamba_block.1} parent=1 // pred_region
      _
    $region57: #{mamba_block.1} parent=1 // pred_fallthru
      _
    // Predicated region
    $region58: #{mamba_block.1} parent=1 // pred_check
      _
    $region59: #{mamba_block.1} parent=1 // pred_check_branch
      %79 = sbr.rel (0) target = $region61
    $region60: #{mamba_block.1} parent=1 // pred_region
      %s81 = ssub.s32 16, 16
      %82 = vsyncadd [#allocation10], %s81
      %s84 = sshll.u32 [#allocation9], 4
      %s85 = int_to_ptr.vmem [resolvable:$true] %s84
      %87 = dma.hbm_to_vmem [thread:$0]  %s14, 16, %s85, [#allocation10]
    $region61: #{mamba_block.1} parent=1 // pred_fallthru
      _
    // Predicated region
    $region62: #{mamba_block.1} parent=1 // pred_check
      _
    $region63: #{mamba_block.1} parent=1 // pred_check_branch
      %89 = sbr.rel (0) target = $region65
    $region64: #{mamba_block.1} parent=1 // pred_region
      _
    $region65: #{mamba_block.1} parent=1 // pred_fallthru
      _
    // Predicated region
    $region66: #{mamba_block.1} parent=1 // pred_check
      _
    $region67: #{mamba_block.1} parent=1 // pred_check_branch
      %91 = sbr.rel (0) target = $region69
    $region68: #{mamba_block.1} parent=1 // pred_region
      _
    $region69: #{mamba_block.1} parent=1 // pred_fallthru
      _
    // Predicated region
    $region70: #{mamba_block.1} parent=1 // pred_check
      _
    $region71: #{mamba_block.1} parent=1 // pred_check_branch
      %93 = sbr.rel (0) target = $region73
    $region72: #{mamba_block.1} parent=1 // pred_region
      %94 = dma.done [#allocation4], 64
    $region73: #{mamba_block.1} parent=1 // pred_fallthru
      _
    // Predicated region
    $region74: #{mamba_block.1} parent=1 // pred_check
      _
    $region75: #{mamba_block.1} parent=1 // pred_check_branch
      %96 = sbr.rel (0) target = $region77
    $region76: #{mamba_block.1} parent=1 // pred_region
      %97 = dma.done [#allocation7], 16
    $region77: #{mamba_block.1} parent=1 // pred_fallthru
      _
    // Predicated region
    $region78: #{mamba_block.1} parent=1 // pred_check
      _
    $region79: #{mamba_block.1} parent=1 // pred_check_branch
      %99 = sbr.rel (0) target = $region81
    $region80: #{mamba_block.1} parent=1 // pred_region
      %100 = dma.done [#allocation7], 16
    $region81: #{mamba_block.1} parent=1 // pred_fallthru
      _
    // Predicated region
    $region82: #{mamba_block.1} parent=1 // pred_check
      _
    $region83: #{mamba_block.1} parent=1 // pred_check_branch
      %102 = sbr.rel (0) target = $region85
    $region84: #{mamba_block.1} parent=1 // pred_region
      %103 = dma.done [#allocation10], 16
    $region85: #{mamba_block.1} parent=1 // pred_fallthru
      _
    %v105 = vld [vmem:[%s0] sm:$0xff]
    %v106 = vld [vmem:[%s0 + $0x8] sm:$0xff]
    %v107 = vpack.c.bf16 %v106, %v105
    %v108 = vld [vmem:[%s1] sm:$0xf]
    %v109 = vld [vmem:[%s1 + $0x4] sm:$0xf]
    %v110 = vld [vmem:[%s1 + $0x8] sm:$0xf]
    %v111 = vld [vmem:[%s1 + $0xc] sm:$0xf]
    %v116 = vunpack.c.l.b16 %v108
    %v117 = vunpack.c.l.b16 %v109
    %v118 = vunpack.c.l.b16 %v110
    %v119 = vunpack.c.l.b16 %v111
    %v120 = vpack.c.b16 %v117, %v116
    %v121 = vpack.c.b16 %v119, %v118
    %vm124 = vcmask 261120
    %v126 = vsel %vm124, %v107, 0
    %128 = vmatprep.subr.bf16.mxu0 0
    %129 = vmatpush1.bf16.msra.mxu0 %v120
    %130 = vmatprep.subr.bf16.mxu0 0
    %131 = vmatpush1.bf16.msra.mxu0 %v121
    %132 = vmatprep.subr.bf16.mxu0 0
    %133 = vmatpush1.bf16.msra.mxu0 0
    %134 = vmatprep.subr.bf16.mxu0 0
    %135 = vmatpush1.bf16.msra.mxu0 0
    %136 = vmatprep.subr.bf16.mxu0 0
    %137 = vmatpush1.bf16.msra.mxu0 0
    %138 = vmatprep.subr.bf16.mxu0 0
    %139 = vmatpush1.bf16.msra.mxu0 0
    %140 = vmatprep.subr.bf16.mxu0 0
    %141 = vmatpush1.bf16.msra.mxu0 0
    %142 = vmatprep.subr.bf16.mxu0 0
    %143 = vmatpush1.bf16.msra.mxu0 0
    %144 = vmatprep.subr.bf16.mxu0 0
    %145 = vmatpush1.bf16.msra.mxu0 0
    %146 = vmatprep.subr.bf16.mxu0 0
    %147 = vmatpush1.bf16.msra.mxu0 0
    %148 = vmatprep.subr.bf16.mxu0 0
    %149 = vmatpush1.bf16.msra.mxu0 0
    %150 = vmatprep.subr.bf16.mxu0 0
    %151 = vmatpush1.bf16.msra.mxu0 0
    %152 = vmatprep.subr.bf16.mxu0 0
    %153 = vmatpush1.bf16.msra.mxu0 0
    %154 = vmatprep.subr.bf16.mxu0 0
    %155 = vmatpush1.bf16.msra.mxu0 0
    %156 = vmatprep.subr.bf16.mxu0 0
    %157 = vmatpush1.bf16.msra.mxu0 0
    %158 = vmatprep.subr.bf16.mxu0 0
    %159 = vmatpush1.bf16.msra.mxu0 0
    %160 = vmatprep.mubr.bf16.mxu0 0
    %161 = vmatmul.mubr.bf16.gmra.mrb[0].mxu0 %v126
    %v162 = vpop.f32.mrb[0].mxu0
    %v163 = vadd.f32 0.0, %v162
    %v164 = vpop.f32.mrb[0].mxu0
    %v165 = vpop.f32.mrb[0].mxu0
    %v166 = vadd.f32 0.0, %v165
    %v167 = vpop.f32.mrb[0].mxu0
    %168 = vdwg.mxu0
    %v169 = vld [vmem:[#allocation3] sm:$0xf]
    %v170 = vlaneseq
    %v171 = vshrl.u32 %v170, 7
    %v172 = vadd.s32 %v171, 8
    %vm173 = vcmp.lt.s32.totalorder %v171, 0
    %v174 = vsub.s32 0, %v171
    %v175 = vsel %vm173, %v174, %v171
    %v176 = vshrl.u32 %v175, 3
    %v177 = vand.u32 %v175, 7
    %v178 = vsub.s32 0, %v177
    %v179 = vsel %vm173, %v178, %v177
    %vm180 = vcmp.lt.s32.totalorder %v172, 0
    %v181 = vsub.s32 0, %v172
    %v182 = vsel %vm180, %v181, %v172
    %v183 = vshrl.u32 %v182, 3
    %v184 = vand.u32 %v182, 7
    %v185 = vsub.s32 0, %v184
    %v186 = vsel %vm180, %v185, %v184
    %vm187 = vcmp.ne.s32.totalorder %v179, 0
    %vm188 = vcmp.ne.s32.totalorder %v186, 0
    %vm189 = vcmp.lt.s32.totalorder %v179, 0
    %vm190 = vcmp.lt.s32.totalorder %v186, 0
    %vm191 = vmand %vm189, %vm187
    %vm192 = vmand %vm190, %vm188
    %v193 = vadd.s32 %v179, 8
    %v194 = vadd.s32 %v186, 8
    %v195 = vsel %vm191, %v193, %v179
    %v196 = vsel %vm192, %v194, %v186
    %v197 = vlaneseq
    %v198 = vshrl.u32 %v197, 7
    %v199 = vsub.s32 3, %v198
    %v200 = vrot.slane %v169, %v199
    %v201 = vmul.f32 %v163, %v200
    %v202 = vmul.f32 %v166, %v200
    %v203 = vrot.slane %v163, 5
    %v204 = vrot.slane %v166, 5
    %vm205 = vcmp.lt.s32.totalorder %v171, 3
    %v206 = vsel %vm205, %v203, %v204
    %v207 = vsel %vm205, %v204, %v203
    %vm208 = vcmp.ge.s32.totalorder %v195, 3
    %vm209 = vcmp.ge.s32.totalorder %v196, 3
    %v210 = vsel %vm208, %v207, 0.0
    %v211 = vsel %vm209, %v206, 0.0
    %v212 = vlaneseq
    %v213 = vshrl.u32 %v212, 7
    %v214 = vsub.s32 0, %v213
    %v215 = vrot.slane %v169, %v214
    %v216 = vmul.f32 %v210, %v215
    %v217 = vmul.f32 %v211, %v215
    %v218 = vadd.f32 %v201, %v216
    %v219 = vadd.f32 %v202, %v217
    %v220 = vrot.slane %v163, 6
    %v221 = vrot.slane %v166, 6
    %vm222 = vcmp.lt.s32.totalorder %v171, 2
    %v223 = vsel %vm222, %v220, %v221
    %v224 = vsel %vm222, %v221, %v220
    %vm225 = vcmp.ge.s32.totalorder %v195, 2
    %vm226 = vcmp.ge.s32.totalorder %v196, 2
    %v227 = vsel %vm225, %v224, 0.0
    %v228 = vsel %vm226, %v223, 0.0
    %v229 = vlaneseq
    %v230 = vshrl.u32 %v229, 7
    %v231 = vsub.s32 1, %v230
    %v232 = vrot.slane %v169, %v231
    %v233 = vmul.f32 %v227, %v232
    %v234 = vmul.f32 %v228, %v232
    %v235 = vadd.f32 %v218, %v233
    %v236 = vadd.f32 %v219, %v234
    %v237 = vrot.slane %v163, 7
    %v238 = vrot.slane %v166, 7
    %vm239 = vcmp.lt.s32.totalorder %v171, 1
    %v240 = vsel %vm239, %v237, %v238
    %v241 = vsel %vm239, %v238, %v237
    %vm242 = vcmp.ge.s32.totalorder %v195, 1
    %vm243 = vcmp.ge.s32.totalorder %v196, 1
    %v244 = vsel %vm242, %v241, 0.0
    %v245 = vsel %vm243, %v240, 0.0
    %v246 = vlaneseq
    %v247 = vshrl.u32 %v246, 7
    %v248 = vsub.s32 2, %v247
    %v249 = vrot.slane %v169, %v248
    %v250 = vmul.f32 %v244, %v249
    %v251 = vmul.f32 %v245, %v249
    %v252 = vadd.f32 %v235, %v250
    %v253 = vadd.f32 %v236, %v251
    %v254 = vld [vmem:[%s3] sm:$0x1]
    %v256 = vlaneseq
    %v257 = vshrl.u32 %v256, 7
    %v258 = vsub.s32 0, %v257
    %v259 = vrot.slane %v254, %v258
    %v261 = vadd.f32 %v252, %v259
    %v262 = vadd.f32 %v253, %v259
    %v263 = vsub.f32 0.0, %v261
    %v264 = vsub.f32 0.0, %v262
    %v265 = vmul.f32 %v263, 1.442695
    %v266 = vpow.pop %v265
    %v267 = vmul.f32 %v264, 1.442695
    %v268 = vpow.pop %v267
    %v269 = vadd.f32 %v266, 1.0
    %v270 = vadd.f32 %v268, 1.0
    %v271 = vrcp.pop %v269
    %v272 = vrcp.pop %v270
    %v273 = vmul.f32 %v261, %v271
    %v274 = vmul.f32 %v262, %v272
    %v275 = vpack.c.bf16 %v274, %v273
    %v276 = vld [vmem:[%s4] sm:$0xf]
    %v277 = vld [vmem:[%s4 + $0x4] sm:$0xf]
    %v278 = vld [vmem:[%s4 + $0x8] sm:$0xf]
    %v279 = vld [vmem:[%s4 + $0xc] sm:$0xf]
    %v280 = vld [vmem:[%s4 + $0x10] sm:$0xf]
    %v281 = vld [vmem:[%s4 + $0x14] sm:$0xf]
    %v282 = vld [vmem:[%s4 + $0x18] sm:$0xf]
    %v283 = vld [vmem:[%s4 + $0x1c] sm:$0xf]
    %v292 = vunpack.c.l.b16 %v276
    %v293 = vunpack.c.l.b16 %v277
    %v294 = vunpack.c.l.b16 %v278
    %v295 = vunpack.c.l.b16 %v279
    %v296 = vunpack.c.l.b16 %v280
    %v297 = vunpack.c.l.b16 %v281
    %v298 = vunpack.c.l.b16 %v282
    %v299 = vunpack.c.l.b16 %v283
    %v300 = vpack.c.b16 %v293, %v292
    %v301 = vpack.c.b16 %v295, %v294
    %v302 = vpack.c.b16 %v297, %v296
    %v303 = vpack.c.b16 %v299, %v298
    %vm308 = vcmask 523264
    %v310 = vsel %vm308, %v275, 0
    %312 = vmatprep.subr.bf16.mxu0 0
    %313 = vmatpush1.bf16.msra.mxu0 %v300
    %314 = vmatprep.subr.bf16.mxu0 0
    %315 = vmatpush1.bf16.msra.mxu0 %v301
    %316 = vmatprep.subr.bf16.mxu0 0
    %317 = vmatpush1.bf16.msra.mxu0 %v302
    %318 = vmatprep.subr.bf16.mxu0 0
    %319 = vmatpush1.bf16.msra.mxu0 %v303
    %320 = vmatprep.subr.bf16.mxu0 0
    %321 = vmatpush1.bf16.msra.mxu0 0
    %322 = vmatprep.subr.bf16.mxu0 0
    %323 = vmatpush1.bf16.msra.mxu0 0
    %324 = vmatprep.subr.bf16.mxu0 0
    %325 = vmatpush1.bf16.msra.mxu0 0
    %326 = vmatprep.subr.bf16.mxu0 0
    %327 = vmatpush1.bf16.msra.mxu0 0
    %328 = vmatprep.subr.bf16.mxu0 0
    %329 = vmatpush1.bf16.msra.mxu0 0
    %330 = vmatprep.subr.bf16.mxu0 0
    %331 = vmatpush1.bf16.msra.mxu0 0
    %332 = vmatprep.subr.bf16.mxu0 0
    %333 = vmatpush1.bf16.msra.mxu0 0
    %334 = vmatprep.subr.bf16.mxu0 0
    %335 = vmatpush1.bf16.msra.mxu0 0
    %336 = vmatprep.subr.bf16.mxu0 0
    %337 = vmatpush1.bf16.msra.mxu0 0
    %338 = vmatprep.subr.bf16.mxu0 0
    %339 = vmatpush1.bf16.msra.mxu0 0
    %340 = vmatprep.subr.bf16.mxu0 0
    %341 = vmatpush1.bf16.msra.mxu0 0
    %342 = vmatprep.subr.bf16.mxu0 0
    %343 = vmatpush1.bf16.msra.mxu0 0
    %344 = vmatprep.mubr.bf16.mxu0 0
    %345 = vmatmul.mubr.bf16.gmra.mrb[0].mxu0 %v310
    %v346 = vpop.f32.mrb[0].mxu0
    %v347 = vadd.f32 0.0, %v346
    %v348 = vpop.f32.mrb[0].mxu0
    %v349 = vpop.f32.mrb[0].mxu0
    %v350 = vadd.f32 0.0, %v349
    %v351 = vpop.f32.mrb[0].mxu0
    %352 = vdwg.mxu0
    %v353 = vld [vmem:[%s5] sm:$0x1]
    %v355 = vlaneseq
    %v356 = vshrl.u32 %v355, 7
    %v357 = vsub.s32 0, %v356
    %v358 = vrot.slane %v353, %v357
    %v360 = vadd.f32 %v347, %v358
    %v361 = vadd.f32 %v350, %v358
    %v362 = vmax.f32 %v360, 0.0
    %v363 = vmax.f32 %v361, 0.0
    %v364 = vand.u32 2147483647, %v360
    %v365 = vand.u32 2147483647, %v361
    %v366 = vsub.f32 0.0, %v364
    %v367 = vsub.f32 0.0, %v365
    %v368 = vmul.f32 %v366, 1.442695
    %v369 = vpow.pop %v368
    %v370 = vmul.f32 %v367, 1.442695
    %v371 = vpow.pop %v370
    %v372 = vadd.f32 %v369, 1.0
    %v373 = vadd.f32 %v371, 1.0
    %v374 = vlog2.pop %v372
    %v375 = vmul.f32 %v374, 0.6931472
    %v376 = vlog2.pop %v373
    %v377 = vmul.f32 %v376, 0.6931472
    %v378 = vadd.f32 %v362, %v375
    %v379 = vadd.f32 %v363, %v377
    %vm380 = vcmp.gt.f32.partialorder %v360, 20.0
    %vm381 = vcmp.gt.f32.partialorder %v361, 20.0
    %v382 = vsel %vm380, %v360, %v378
    %v383 = vsel %vm381, %v361, %v379
    %v384 = vld [vmem:[%s6] sm:$0xff]
    %v385 = vld [vmem:[%s6 + $0x8] sm:$0xff]
    %v386 = vmul.f32 %v384, 1.442695
    %v387 = vpow.pop %v386
    %v388 = vmul.f32 %v385, 1.442695
    %v389 = vpow.pop %v388
    %v390 = vsub.f32 0.0, %v387
    %v391 = vsub.f32 0.0, %v389
    %v392 = vmul.f32 %v382, %v273
    %v393 = vmul.f32 %v383, %v274
    %v396 = vcombine.high %v382, %v382
    %v398 = vunpack.c.l.s4 1966171168
    %v399 = vunpack.c.0.s8 %v398
    %v400 = vlaneseq
    %v401 = vshrl.u32 %v400, 7
    %v402 = vsub.s32 %v399, %v401
    %v403 = vrot.slane %v382, %v402
    %v405 = vunpack.c.l.s4 1966171168
    %v406 = vunpack.c.0.s8 %v405
    %v407 = vlaneseq
    %v408 = vshrl.u32 %v407, 7
    %v409 = vsub.s32 %v406, %v408
    %v410 = vrot.slane %v396, %v409
    %v411 = vcombine.high %v403, %v403
    %v412 = vcombine.high %v410, %v410
    %v414 = vunpack.c.l.s4 1966171168
    %v415 = vunpack.c.0.s8 %v414
    %v416 = vlaneseq
    %v417 = vshrl.u32 %v416, 7
    %v418 = vsub.s32 %v415, %v417
    %v419 = vrot.slane %v403, %v418
    %v421 = vunpack.c.l.s4 1966171168
    %v422 = vunpack.c.0.s8 %v421
    %v423 = vlaneseq
    %v424 = vshrl.u32 %v423, 7
    %v425 = vsub.s32 %v422, %v424
    %v426 = vrot.slane %v410, %v425
    %v428 = vunpack.c.l.s4 1966171168
    %v429 = vunpack.c.0.s8 %v428
    %v430 = vlaneseq
    %v431 = vshrl.u32 %v430, 7
    %v432 = vsub.s32 %v429, %v431
    %v433 = vrot.slane %v411, %v432
    %v435 = vunpack.c.l.s4 1966171168
    %v436 = vunpack.c.0.s8 %v435
    %v437 = vlaneseq
    %v438 = vshrl.u32 %v437, 7
    %v439 = vsub.s32 %v436, %v438
    %v440 = vrot.slane %v412, %v439
    %v441 = vcombine.high %v419, %v419
    %v442 = vcombine.high %v426, %v426
    %v443 = vcombine.high %v433, %v433
    %v444 = vcombine.high %v440, %v440
    %v445 = vcombine.high %v383, %v383
    %v447 = vunpack.c.l.s4 1966171168
    %v448 = vunpack.c.0.s8 %v447
    %v449 = vlaneseq
    %v450 = vshrl.u32 %v449, 7
    %v451 = vsub.s32 %v448, %v450
    %v452 = vrot.slane %v383, %v451
    %v454 = vunpack.c.l.s4 1966171168
    %v455 = vunpack.c.0.s8 %v454
    %v456 = vlaneseq
    %v457 = vshrl.u32 %v456, 7
    %v458 = vsub.s32 %v455, %v457
    %v459 = vrot.slane %v445, %v458
    %v460 = vcombine.high %v452, %v452
    %v461 = vcombine.high %v459, %v459
    %v463 = vunpack.c.l.s4 1966171168
    %v464 = vunpack.c.0.s8 %v463
    %v465 = vlaneseq
    %v466 = vshrl.u32 %v465, 7
    %v467 = vsub.s32 %v464, %v466
    %v468 = vrot.slane %v452, %v467
    %v470 = vunpack.c.l.s4 1966171168
    %v471 = vunpack.c.0.s8 %v470
    %v472 = vlaneseq
    %v473 = vshrl.u32 %v472, 7
    %v474 = vsub.s32 %v471, %v473
    %v475 = vrot.slane %v459, %v474
    %v477 = vunpack.c.l.s4 1966171168
    %v478 = vunpack.c.0.s8 %v477
    %v479 = vlaneseq
    %v480 = vshrl.u32 %v479, 7
    %v481 = vsub.s32 %v478, %v480
    %v482 = vrot.slane %v460, %v481
    %v484 = vunpack.c.l.s4 1966171168
    %v485 = vunpack.c.0.s8 %v484
    %v486 = vlaneseq
    %v487 = vshrl.u32 %v486, 7
    %v488 = vsub.s32 %v485, %v487
    %v489 = vrot.slane %v461, %v488
    %v490 = vcombine.high %v468, %v468
    %v491 = vcombine.high %v475, %v475
    %v492 = vcombine.high %v482, %v482
    %v493 = vcombine.high %v489, %v489
    %v494 = vlaneseq
    %v495 = vshrl.u32 %v494, 7
    %v496 = vsub.s32 0, %v495
    %v497 = vrot.slane %v419, %v496
    %v498 = vlaneseq
    %v499 = vshrl.u32 %v498, 7
    %v500 = vsub.s32 0, %v499
    %v501 = vrot.slane %v433, %v500
    %v502 = vlaneseq
    %v503 = vshrl.u32 %v502, 7
    %v504 = vsub.s32 0, %v503
    %v505 = vrot.slane %v441, %v504
    %v506 = vlaneseq
    %v507 = vshrl.u32 %v506, 7
    %v508 = vsub.s32 0, %v507
    %v509 = vrot.slane %v443, %v508
    %v510 = vlaneseq
    %v511 = vshrl.u32 %v510, 7
    %v512 = vsub.s32 0, %v511
    %v513 = vrot.slane %v426, %v512
    %v514 = vlaneseq
    %v515 = vshrl.u32 %v514, 7
    %v516 = vsub.s32 0, %v515
    %v517 = vrot.slane %v440, %v516
    %v518 = vlaneseq
    %v519 = vshrl.u32 %v518, 7
    %v520 = vsub.s32 0, %v519
    %v521 = vrot.slane %v442, %v520
    %v522 = vlaneseq
    %v523 = vshrl.u32 %v522, 7
    %v524 = vsub.s32 0, %v523
    %v525 = vrot.slane %v444, %v524
    %v526 = vlaneseq
    %v527 = vshrl.u32 %v526, 7
    %v528 = vsub.s32 0, %v527
    %v529 = vrot.slane %v468, %v528
    %v530 = vlaneseq
    %v531 = vshrl.u32 %v530, 7
    %v532 = vsub.s32 0, %v531
    %v533 = vrot.slane %v482, %v532
    %v534 = vlaneseq
    %v535 = vshrl.u32 %v534, 7
    %v536 = vsub.s32 0, %v535
    %v537 = vrot.slane %v490, %v536
    %v538 = vlaneseq
    %v539 = vshrl.u32 %v538, 7
    %v540 = vsub.s32 0, %v539
    %v541 = vrot.slane %v492, %v540
    %v542 = vlaneseq
    %v543 = vshrl.u32 %v542, 7
    %v544 = vsub.s32 0, %v543
    %v545 = vrot.slane %v475, %v544
    %v546 = vlaneseq
    %v547 = vshrl.u32 %v546, 7
    %v548 = vsub.s32 0, %v547
    %v549 = vrot.slane %v489, %v548
    %v550 = vlaneseq
    %v551 = vshrl.u32 %v550, 7
    %v552 = vsub.s32 0, %v551
    %v553 = vrot.slane %v491, %v552
    %v554 = vlaneseq
    %v555 = vshrl.u32 %v554, 7
    %v556 = vsub.s32 0, %v555
    %v557 = vrot.slane %v493, %v556
    %v574 = vmul.f32 %v497, %v390
    %v575 = vmul.f32 %v497, %v391
    %v576 = vmul.f32 %v501, %v390
    %v577 = vmul.f32 %v501, %v391
    %v578 = vmul.f32 %v505, %v390
    %v579 = vmul.f32 %v505, %v391
    %v580 = vmul.f32 %v509, %v390
    %v581 = vmul.f32 %v509, %v391
    %v582 = vmul.f32 %v513, %v390
    %v583 = vmul.f32 %v513, %v391
    %v584 = vmul.f32 %v517, %v390
    %v585 = vmul.f32 %v517, %v391
    %v586 = vmul.f32 %v521, %v390
    %v587 = vmul.f32 %v521, %v391
    %v588 = vmul.f32 %v525, %v390
    %v589 = vmul.f32 %v525, %v391
    %v590 = vmul.f32 %v529, %v390
    %v591 = vmul.f32 %v529, %v391
    %v592 = vmul.f32 %v533, %v390
    %v593 = vmul.f32 %v533, %v391
    %v594 = vmul.f32 %v537, %v390
    %v595 = vmul.f32 %v537, %v391
    %v596 = vmul.f32 %v541, %v390
    %v597 = vmul.f32 %v541, %v391
    %v598 = vmul.f32 %v545, %v390
    %v599 = vmul.f32 %v545, %v391
    %v600 = vmul.f32 %v549, %v390
    %v601 = vmul.f32 %v549, %v391
    %v602 = vmul.f32 %v553, %v390
    %v603 = vmul.f32 %v553, %v391
    %v604 = vmul.f32 %v557, %v390
    %v605 = vmul.f32 %v557, %v391
    %v606 = vmul.f32 %v574, 1.442695
    %v607 = vpow.pop %v606
    %v608 = vmul.f32 %v575, 1.442695
    %v609 = vpow.pop %v608
    %v610 = vmul.f32 %v576, 1.442695
    %v611 = vpow.pop %v610
    %v612 = vmul.f32 %v577, 1.442695
    %v613 = vpow.pop %v612
    %v614 = vmul.f32 %v578, 1.442695
    %v615 = vpow.pop %v614
    %v616 = vmul.f32 %v579, 1.442695
    %v617 = vpow.pop %v616
    %v618 = vmul.f32 %v580, 1.442695
    %v619 = vpow.pop %v618
    %v620 = vmul.f32 %v581, 1.442695
    %v621 = vpow.pop %v620
    %v622 = vmul.f32 %v582, 1.442695
    %v623 = vpow.pop %v622
    %v624 = vmul.f32 %v583, 1.442695
    %v625 = vpow.pop %v624
    %v626 = vmul.f32 %v584, 1.442695
    %v627 = vpow.pop %v626
    %v628 = vmul.f32 %v585, 1.442695
    %v629 = vpow.pop %v628
    %v630 = vmul.f32 %v586, 1.442695
    %v631 = vpow.pop %v630
    %v632 = vmul.f32 %v587, 1.442695
    %v633 = vpow.pop %v632
    %v634 = vmul.f32 %v588, 1.442695
    %v635 = vpow.pop %v634
    %v636 = vmul.f32 %v589, 1.442695
    %v637 = vpow.pop %v636
    %v638 = vmul.f32 %v590, 1.442695
    %v639 = vpow.pop %v638
    %v640 = vmul.f32 %v591, 1.442695
    %v641 = vpow.pop %v640
    %v642 = vmul.f32 %v592, 1.442695
    %v643 = vpow.pop %v642
    %v644 = vmul.f32 %v593, 1.442695
    %v645 = vpow.pop %v644
    %v646 = vmul.f32 %v594, 1.442695
    %v647 = vpow.pop %v646
    %v648 = vmul.f32 %v595, 1.442695
    %v649 = vpow.pop %v648
    %v650 = vmul.f32 %v596, 1.442695
    %v651 = vpow.pop %v650
    %v652 = vmul.f32 %v597, 1.442695
    %v653 = vpow.pop %v652
    %v654 = vmul.f32 %v598, 1.442695
    %v655 = vpow.pop %v654
    %v656 = vmul.f32 %v599, 1.442695
    %v657 = vpow.pop %v656
    %v658 = vmul.f32 %v600, 1.442695
    %v659 = vpow.pop %v658
    %v660 = vmul.f32 %v601, 1.442695
    %v661 = vpow.pop %v660
    %v662 = vmul.f32 %v602, 1.442695
    %v663 = vpow.pop %v662
    %v664 = vmul.f32 %v603, 1.442695
    %v665 = vpow.pop %v664
    %v666 = vmul.f32 %v604, 1.442695
    %v667 = vpow.pop %v666
    %v668 = vmul.f32 %v605, 1.442695
    %v669 = vpow.pop %v668
    %v670 = vlaneseq
    %v671 = vshrl.u32 %v670, 7
    %v672 = vsub.s32 0, %v671
    %v673 = vrot.slane %v347, %v672
    %s675 = sor.u32 256, 64
    %676 = vbcast.lane.b32.xlu0 %v673, %s675
    %v677 = vpop.permute.xlu0 %676
    %s679 = sor.u32 256, 72
    %680 = vbcast.lane.b32.xlu0 %v673, %s679
    %v681 = vpop.permute.xlu0 %680
    %v682 = vlaneseq
    %v683 = vshrl.u32 %v682, 7
    %v684 = vsub.s32 1, %v683
    %v685 = vrot.slane %v347, %v684
    %s687 = sor.u32 256, 64
    %688 = vbcast.lane.b32.xlu0 %v685, %s687
    %v689 = vpop.permute.xlu0 %688
    %s691 = sor.u32 256, 72
    %692 = vbcast.lane.b32.xlu0 %v685, %s691
    %v693 = vpop.permute.xlu0 %692
    %v694 = vlaneseq
    %v695 = vshrl.u32 %v694, 7
    %v696 = vsub.s32 2, %v695
    %v697 = vrot.slane %v347, %v696
    %s699 = sor.u32 256, 64
    %700 = vbcast.lane.b32.xlu0 %v697, %s699
    %v701 = vpop.permute.xlu0 %700
    %s703 = sor.u32 256, 72
    %704 = vbcast.lane.b32.xlu0 %v697, %s703
    %v705 = vpop.permute.xlu0 %704
    %v706 = vlaneseq
    %v707 = vshrl.u32 %v706, 7
    %v708 = vsub.s32 3, %v707
    %v709 = vrot.slane %v347, %v708
    %s711 = sor.u32 256, 64
    %712 = vbcast.lane.b32.xlu0 %v709, %s711
    %v713 = vpop.permute.xlu0 %712
    %s715 = sor.u32 256, 72
    %716 = vbcast.lane.b32.xlu0 %v709, %s715
    %v717 = vpop.permute.xlu0 %716
    %v718 = vlaneseq
    %v719 = vshrl.u32 %v718, 7
    %v720 = vsub.s32 4, %v719
    %v721 = vrot.slane %v347, %v720
    %s723 = sor.u32 256, 64
    %724 = vbcast.lane.b32.xlu0 %v721, %s723
    %v725 = vpop.permute.xlu0 %724
    %s727 = sor.u32 256, 72
    %728 = vbcast.lane.b32.xlu0 %v721, %s727
    %v729 = vpop.permute.xlu0 %728
    %v730 = vlaneseq
    %v731 = vshrl.u32 %v730, 7
    %v732 = vsub.s32 5, %v731
    %v733 = vrot.slane %v347, %v732
    %s735 = sor.u32 256, 64
    %736 = vbcast.lane.b32.xlu0 %v733, %s735
    %v737 = vpop.permute.xlu0 %736
    %s739 = sor.u32 256, 72
    %740 = vbcast.lane.b32.xlu0 %v733, %s739
    %v741 = vpop.permute.xlu0 %740
    %v742 = vlaneseq
    %v743 = vshrl.u32 %v742, 7
    %v744 = vsub.s32 6, %v743
    %v745 = vrot.slane %v347, %v744
    %s747 = sor.u32 256, 64
    %748 = vbcast.lane.b32.xlu0 %v745, %s747
    %v749 = vpop.permute.xlu0 %748
    %s751 = sor.u32 256, 72
    %752 = vbcast.lane.b32.xlu0 %v745, %s751
    %v753 = vpop.permute.xlu0 %752
    %v754 = vlaneseq
    %v755 = vshrl.u32 %v754, 7
    %v756 = vsub.s32 7, %v755
    %v757 = vrot.slane %v347, %v756
    %s759 = sor.u32 256, 64
    %760 = vbcast.lane.b32.xlu0 %v757, %s759
    %v761 = vpop.permute.xlu0 %760
    %s763 = sor.u32 256, 72
    %764 = vbcast.lane.b32.xlu0 %v757, %s763
    %v765 = vpop.permute.xlu0 %764
    %v766 = vlaneseq
    %v767 = vshrl.u32 %v766, 7
    %v768 = vsub.s32 0, %v767
    %v769 = vrot.slane %v350, %v768
    %s771 = sor.u32 256, 64
    %772 = vbcast.lane.b32.xlu0 %v769, %s771
    %v773 = vpop.permute.xlu0 %772
    %s775 = sor.u32 256, 72
    %776 = vbcast.lane.b32.xlu0 %v769, %s775
    %v777 = vpop.permute.xlu0 %776
    %v778 = vlaneseq
    %v779 = vshrl.u32 %v778, 7
    %v780 = vsub.s32 1, %v779
    %v781 = vrot.slane %v350, %v780
    %s783 = sor.u32 256, 64
    %784 = vbcast.lane.b32.xlu0 %v781, %s783
    %v785 = vpop.permute.xlu0 %784
    %s787 = sor.u32 256, 72
    %788 = vbcast.lane.b32.xlu0 %v781, %s787
    %v789 = vpop.permute.xlu0 %788
    %v790 = vlaneseq
    %v791 = vshrl.u32 %v790, 7
    %v792 = vsub.s32 2, %v791
    %v793 = vrot.slane %v350, %v792
    %s795 = sor.u32 256, 64
    %796 = vbcast.lane.b32.xlu0 %v793, %s795
    %v797 = vpop.permute.xlu0 %796
    %s799 = sor.u32 256, 72
    %800 = vbcast.lane.b32.xlu0 %v793, %s799
    %v801 = vpop.permute.xlu0 %800
    %v802 = vlaneseq
    %v803 = vshrl.u32 %v802, 7
    %v804 = vsub.s32 3, %v803
    %v805 = vrot.slane %v350, %v804
    %s807 = sor.u32 256, 64
    %808 = vbcast.lane.b32.xlu0 %v805, %s807
    %v809 = vpop.permute.xlu0 %808
    %s811 = sor.u32 256, 72
    %812 = vbcast.lane.b32.xlu0 %v805, %s811
    %v813 = vpop.permute.xlu0 %812
    %v814 = vlaneseq
    %v815 = vshrl.u32 %v814, 7
    %v816 = vsub.s32 4, %v815
    %v817 = vrot.slane %v350, %v816
    %s819 = sor.u32 256, 64
    %820 = vbcast.lane.b32.xlu0 %v817, %s819
    %v821 = vpop.permute.xlu0 %820
    %s823 = sor.u32 256, 72
    %824 = vbcast.lane.b32.xlu0 %v817, %s823
    %v825 = vpop.permute.xlu0 %824
    %v826 = vlaneseq
    %v827 = vshrl.u32 %v826, 7
    %v828 = vsub.s32 5, %v827
    %v829 = vrot.slane %v350, %v828
    %s831 = sor.u32 256, 64
    %832 = vbcast.lane.b32.xlu0 %v829, %s831
    %v833 = vpop.permute.xlu0 %832
    %s835 = sor.u32 256, 72
    %836 = vbcast.lane.b32.xlu0 %v829, %s835
    %v837 = vpop.permute.xlu0 %836
    %v838 = vlaneseq
    %v839 = vshrl.u32 %v838, 7
    %v840 = vsub.s32 6, %v839
    %v841 = vrot.slane %v350, %v840
    %s843 = sor.u32 256, 64
    %844 = vbcast.lane.b32.xlu0 %v841, %s843
    %v845 = vpop.permute.xlu0 %844
    %s847 = sor.u32 256, 72
    %848 = vbcast.lane.b32.xlu0 %v841, %s847
    %v849 = vpop.permute.xlu0 %848
    %v850 = vlaneseq
    %v851 = vshrl.u32 %v850, 7
    %v852 = vsub.s32 7, %v851
    %v853 = vrot.slane %v350, %v852
    %s855 = sor.u32 256, 64
    %856 = vbcast.lane.b32.xlu0 %v853, %s855
    %v857 = vpop.permute.xlu0 %856
    %s859 = sor.u32 256, 72
    %860 = vbcast.lane.b32.xlu0 %v853, %s859
    %v861 = vpop.permute.xlu0 %860
    %v864 = vcombine.high %v392, %v392
    %v866 = vunpack.c.l.s4 1966171168
    %v867 = vunpack.c.0.s8 %v866
    %v868 = vlaneseq
    %v869 = vshrl.u32 %v868, 7
    %v870 = vsub.s32 %v867, %v869
    %v871 = vrot.slane %v392, %v870
    %v873 = vunpack.c.l.s4 1966171168
    %v874 = vunpack.c.0.s8 %v873
    %v875 = vlaneseq
    %v876 = vshrl.u32 %v875, 7
    %v877 = vsub.s32 %v874, %v876
    %v878 = vrot.slane %v864, %v877
    %v879 = vcombine.high %v871, %v871
    %v880 = vcombine.high %v878, %v878
    %v882 = vunpack.c.l.s4 1966171168
    %v883 = vunpack.c.0.s8 %v882
    %v884 = vlaneseq
    %v885 = vshrl.u32 %v884, 7
    %v886 = vsub.s32 %v883, %v885
    %v887 = vrot.slane %v871, %v886
    %v889 = vunpack.c.l.s4 1966171168
    %v890 = vunpack.c.0.s8 %v889
    %v891 = vlaneseq
    %v892 = vshrl.u32 %v891, 7
    %v893 = vsub.s32 %v890, %v892
    %v894 = vrot.slane %v878, %v893
    %v896 = vunpack.c.l.s4 1966171168
    %v897 = vunpack.c.0.s8 %v896
    %v898 = vlaneseq
    %v899 = vshrl.u32 %v898, 7
    %v900 = vsub.s32 %v897, %v899
    %v901 = vrot.slane %v879, %v900
    %v903 = vunpack.c.l.s4 1966171168
    %v904 = vunpack.c.0.s8 %v903
    %v905 = vlaneseq
    %v906 = vshrl.u32 %v905, 7
    %v907 = vsub.s32 %v904, %v906
    %v908 = vrot.slane %v880, %v907
    %v909 = vcombine.high %v887, %v887
    %v910 = vcombine.high %v894, %v894
    %v911 = vcombine.high %v901, %v901
    %v912 = vcombine.high %v908, %v908
    %v913 = vcombine.high %v393, %v393
    %v915 = vunpack.c.l.s4 1966171168
    %v916 = vunpack.c.0.s8 %v915
    %v917 = vlaneseq
    %v918 = vshrl.u32 %v917, 7
    %v919 = vsub.s32 %v916, %v918
    %v920 = vrot.slane %v393, %v919
    %v922 = vunpack.c.l.s4 1966171168
    %v923 = vunpack.c.0.s8 %v922
    %v924 = vlaneseq
    %v925 = vshrl.u32 %v924, 7
    %v926 = vsub.s32 %v923, %v925
    %v927 = vrot.slane %v913, %v926
    %v928 = vcombine.high %v920, %v920
    %v929 = vcombine.high %v927, %v927
    %v931 = vunpack.c.l.s4 1966171168
    %v932 = vunpack.c.0.s8 %v931
    %v933 = vlaneseq
    %v934 = vshrl.u32 %v933, 7
    %v935 = vsub.s32 %v932, %v934
    %v936 = vrot.slane %v920, %v935
    %v938 = vunpack.c.l.s4 1966171168
    %v939 = vunpack.c.0.s8 %v938
    %v940 = vlaneseq
    %v941 = vshrl.u32 %v940, 7
    %v942 = vsub.s32 %v939, %v941
    %v943 = vrot.slane %v927, %v942
    %v945 = vunpack.c.l.s4 1966171168
    %v946 = vunpack.c.0.s8 %v945
    %v947 = vlaneseq
    %v948 = vshrl.u32 %v947, 7
    %v949 = vsub.s32 %v946, %v948
    %v950 = vrot.slane %v928, %v949
    %v952 = vunpack.c.l.s4 1966171168
    %v953 = vunpack.c.0.s8 %v952
    %v954 = vlaneseq
    %v955 = vshrl.u32 %v954, 7
    %v956 = vsub.s32 %v953, %v955
    %v957 = vrot.slane %v929, %v956
    %v958 = vcombine.high %v936, %v936
    %v959 = vcombine.high %v943, %v943
    %v960 = vcombine.high %v950, %v950
    %v961 = vcombine.high %v957, %v957
    %v962 = vlaneseq
    %v963 = vshrl.u32 %v962, 7
    %v964 = vsub.s32 0, %v963
    %v965 = vrot.slane %v887, %v964
    %v966 = vlaneseq
    %v967 = vshrl.u32 %v966, 7
    %v968 = vsub.s32 0, %v967
    %v969 = vrot.slane %v901, %v968
    %v970 = vlaneseq
    %v971 = vshrl.u32 %v970, 7
    %v972 = vsub.s32 0, %v971
    %v973 = vrot.slane %v909, %v972
    %v974 = vlaneseq
    %v975 = vshrl.u32 %v974, 7
    %v976 = vsub.s32 0, %v975
    %v977 = vrot.slane %v911, %v976
    %v978 = vlaneseq
    %v979 = vshrl.u32 %v978, 7
    %v980 = vsub.s32 0, %v979
    %v981 = vrot.slane %v894, %v980
    %v982 = vlaneseq
    %v983 = vshrl.u32 %v982, 7
    %v984 = vsub.s32 0, %v983
    %v985 = vrot.slane %v908, %v984
    %v986 = vlaneseq
    %v987 = vshrl.u32 %v986, 7
    %v988 = vsub.s32 0, %v987
    %v989 = vrot.slane %v910, %v988
    %v990 = vlaneseq
    %v991 = vshrl.u32 %v990, 7
    %v992 = vsub.s32 0, %v991
    %v993 = vrot.slane %v912, %v992
    %v994 = vlaneseq
    %v995 = vshrl.u32 %v994, 7
    %v996 = vsub.s32 0, %v995
    %v997 = vrot.slane %v936, %v996
    %v998 = vlaneseq
    %v999 = vshrl.u32 %v998, 7
    %v1000 = vsub.s32 0, %v999
    %v1001 = vrot.slane %v950, %v1000
    %v1002 = vlaneseq
    %v1003 = vshrl.u32 %v1002, 7
    %v1004 = vsub.s32 0, %v1003
    %v1005 = vrot.slane %v958, %v1004
    %v1006 = vlaneseq
    %v1007 = vshrl.u32 %v1006, 7
    %v1008 = vsub.s32 0, %v1007
    %v1009 = vrot.slane %v960, %v1008
    %v1010 = vlaneseq
    %v1011 = vshrl.u32 %v1010, 7
    %v1012 = vsub.s32 0, %v1011
    %v1013 = vrot.slane %v943, %v1012
    %v1014 = vlaneseq
    %v1015 = vshrl.u32 %v1014, 7
    %v1016 = vsub.s32 0, %v1015
    %v1017 = vrot.slane %v957, %v1016
    %v1018 = vlaneseq
    %v1019 = vshrl.u32 %v1018, 7
    %v1020 = vsub.s32 0, %v1019
    %v1021 = vrot.slane %v959, %v1020
    %v1022 = vlaneseq
    %v1023 = vshrl.u32 %v1022, 7
    %v1024 = vsub.s32 0, %v1023
    %v1025 = vrot.slane %v961, %v1024
    %v1042 = vmul.f32 %v677, %v965
    %v1043 = vmul.f32 %v681, %v965
    %v1044 = vmul.f32 %v689, %v969
    %v1045 = vmul.f32 %v693, %v969
    %v1046 = vmul.f32 %v701, %v973
    %v1047 = vmul.f32 %v705, %v973
    %v1048 = vmul.f32 %v713, %v977
    %v1049 = vmul.f32 %v717, %v977
    %v1050 = vmul.f32 %v725, %v981
    %v1051 = vmul.f32 %v729, %v981
    %v1052 = vmul.f32 %v737, %v985
    %v1053 = vmul.f32 %v741, %v985
    %v1054 = vmul.f32 %v749, %v989
    %v1055 = vmul.f32 %v753, %v989
    %v1056 = vmul.f32 %v761, %v993
    %v1057 = vmul.f32 %v765, %v993
    %v1058 = vmul.f32 %v773, %v997
    %v1059 = vmul.f32 %v777, %v997
    %v1060 = vmul.f32 %v785, %v1001
    %v1061 = vmul.f32 %v789, %v1001
    %v1062 = vmul.f32 %v797, %v1005
    %v1063 = vmul.f32 %v801, %v1005
    %v1064 = vmul.f32 %v809, %v1009
    %v1065 = vmul.f32 %v813, %v1009
    %v1066 = vmul.f32 %v821, %v1013
    %v1067 = vmul.f32 %v825, %v1013
    %v1068 = vmul.f32 %v833, %v1017
    %v1069 = vmul.f32 %v837, %v1017
    %v1070 = vmul.f32 %v845, %v1021
    %v1071 = vmul.f32 %v849, %v1021
    %v1072 = vmul.f32 %v857, %v1025
    %v1073 = vmul.f32 %v861, %v1025
    %v1074 = vmul.f32 %v607, 0.0
    %v1075 = vmul.f32 %v609, 0.0
    %v1076 = vadd.f32 %v1074, %v1042
    %v1077 = vadd.f32 %v1075, %v1043
    %1078 = vst.msk [vmem:[#allocation2] sm:$0xff] %vm308, %v1076
    %1079 = vst.msk [vmem:[#allocation2 + $0x8] sm:$0xff] %vm308, %v1077
    %v1080 = vmul.f32 %v611, %v1076
    %v1081 = vmul.f32 %v613, %v1077
    %v1082 = vadd.f32 %v1080, %v1044
    %v1083 = vadd.f32 %v1081, %v1045
    %s1084 = scalar_lea.vmem [#allocation2], 16
    %1085 = vst.msk [vmem:[%s1084] sm:$0xff] %vm308, %v1082
    %1086 = vst.msk [vmem:[%s1084 + $0x8] sm:$0xff] %vm308, %v1083
    %v1087 = vmul.f32 %v615, %v1082
    %v1088 = vmul.f32 %v617, %v1083
    %v1089 = vadd.f32 %v1087, %v1046
    %v1090 = vadd.f32 %v1088, %v1047
    %s1091 = scalar_lea.vmem [#allocation2], 32
    %1092 = vst.msk [vmem:[%s1091] sm:$0xff] %vm308, %v1089
    %1093 = vst.msk [vmem:[%s1091 + $0x8] sm:$0xff] %vm308, %v1090
    %v1094 = vmul.f32 %v619, %v1089
    %v1095 = vmul.f32 %v621, %v1090
    %v1096 = vadd.f32 %v1094, %v1048
    %v1097 = vadd.f32 %v1095, %v1049
    %s1098 = scalar_lea.vmem [#allocation2], 48
    %1099 = vst.msk [vmem:[%s1098] sm:$0xff] %vm308, %v1096
    %1100 = vst.msk [vmem:[%s1098 + $0x8] sm:$0xff] %vm308, %v1097
    %v1101 = vmul.f32 %v623, %v1096
    %v1102 = vmul.f32 %v625, %v1097
    %v1103 = vadd.f32 %v1101, %v1050
    %v1104 = vadd.f32 %v1102, %v1051
    %s1105 = scalar_lea.vmem [#allocation2], 64
    %1106 = vst.msk [vmem:[%s1105] sm:$0xff] %vm308, %v1103
    %1107 = vst.msk [vmem:[%s1105 + $0x8] sm:$0xff] %vm308, %v1104
    %v1108 = vmul.f32 %v627, %v1103
    %v1109 = vmul.f32 %v629, %v1104
    %v1110 = vadd.f32 %v1108, %v1052
    %v1111 = vadd.f32 %v1109, %v1053
    %s1112 = scalar_lea.vmem [#allocation2], 80
    %1113 = vst.msk [vmem:[%s1112] sm:$0xff] %vm308, %v1110
    %1114 = vst.msk [vmem:[%s1112 + $0x8] sm:$0xff] %vm308, %v1111
    %v1115 = vmul.f32 %v631, %v1110
    %v1116 = vmul.f32 %v633, %v1111
    %v1117 = vadd.f32 %v1115, %v1054
    %v1118 = vadd.f32 %v1116, %v1055
    %s1119 = scalar_lea.vmem [#allocation2], 96
    %1120 = vst.msk [vmem:[%s1119] sm:$0xff] %vm308, %v1117
    %1121 = vst.msk [vmem:[%s1119 + $0x8] sm:$0xff] %vm308, %v1118
    %v1122 = vmul.f32 %v635, %v1117
    %v1123 = vmul.f32 %v637, %v1118
    %v1124 = vadd.f32 %v1122, %v1056
    %v1125 = vadd.f32 %v1123, %v1057
    %s1126 = scalar_lea.vmem [#allocation2], 112
    %1127 = vst.msk [vmem:[%s1126] sm:$0xff] %vm308, %v1124
    %1128 = vst.msk [vmem:[%s1126 + $0x8] sm:$0xff] %vm308, %v1125
    %v1129 = vmul.f32 %v639, 0.0
    %v1130 = vmul.f32 %v641, 0.0
    %v1131 = vadd.f32 %v1129, %v1058
    %v1132 = vadd.f32 %v1130, %v1059
    %s1133 = scalar_lea.vmem [#allocation2], 128
    %1134 = vst.msk [vmem:[%s1133] sm:$0xff] %vm308, %v1131
    %1135 = vst.msk [vmem:[%s1133 + $0x8] sm:$0xff] %vm308, %v1132
    %v1136 = vmul.f32 %v643, %v1131
    %v1137 = vmul.f32 %v645, %v1132
    %v1138 = vadd.f32 %v1136, %v1060
    %v1139 = vadd.f32 %v1137, %v1061
    %s1140 = scalar_lea.vmem [#allocation2], 144
    %1141 = vst.msk [vmem:[%s1140] sm:$0xff] %vm308, %v1138
    %1142 = vst.msk [vmem:[%s1140 + $0x8] sm:$0xff] %vm308, %v1139
    %v1143 = vmul.f32 %v647, %v1138
    %v1144 = vmul.f32 %v649, %v1139
    %v1145 = vadd.f32 %v1143, %v1062
    %v1146 = vadd.f32 %v1144, %v1063
    %s1147 = scalar_lea.vmem [#allocation2], 160
    %1148 = vst.msk [vmem:[%s1147] sm:$0xff] %vm308, %v1145
    %1149 = vst.msk [vmem:[%s1147 + $0x8] sm:$0xff] %vm308, %v1146
    %v1150 = vmul.f32 %v651, %v1145
    %v1151 = vmul.f32 %v653, %v1146
    %v1152 = vadd.f32 %v1150, %v1064
    %v1153 = vadd.f32 %v1151, %v1065
    %s1154 = scalar_lea.vmem [#allocation2], 176
    %1155 = vst.msk [vmem:[%s1154] sm:$0xff] %vm308, %v1152
    %1156 = vst.msk [vmem:[%s1154 + $0x8] sm:$0xff] %vm308, %v1153
    %v1157 = vmul.f32 %v655, %v1152
    %v1158 = vmul.f32 %v657, %v1153
    %v1159 = vadd.f32 %v1157, %v1066
    %v1160 = vadd.f32 %v1158, %v1067
    %s1161 = scalar_lea.vmem [#allocation2], 192
    %1162 = vst.msk [vmem:[%s1161] sm:$0xff] %vm308, %v1159
    %1163 = vst.msk [vmem:[%s1161 + $0x8] sm:$0xff] %vm308, %v1160
    %v1164 = vmul.f32 %v659, %v1159
    %v1165 = vmul.f32 %v661, %v1160
    %v1166 = vadd.f32 %v1164, %v1068
    %v1167 = vadd.f32 %v1165, %v1069
    %s1168 = scalar_lea.vmem [#allocation2], 208
    %1169 = vst.msk [vmem:[%s1168] sm:$0xff] %vm308, %v1166
    %1170 = vst.msk [vmem:[%s1168 + $0x8] sm:$0xff] %vm308, %v1167
    %v1171 = vmul.f32 %v663, %v1166
    %v1172 = vmul.f32 %v665, %v1167
    %v1173 = vadd.f32 %v1171, %v1070
    %v1174 = vadd.f32 %v1172, %v1071
    %s1175 = scalar_lea.vmem [#allocation2], 224
    %1176 = vst.msk [vmem:[%s1175] sm:$0xff] %vm308, %v1173
    %1177 = vst.msk [vmem:[%s1175 + $0x8] sm:$0xff] %vm308, %v1174
    %v1178 = vmul.f32 %v667, %v1173
    %v1179 = vmul.f32 %v669, %v1174
    %v1180 = vadd.f32 %v1178, %v1072
    %v1181 = vadd.f32 %v1179, %v1073
    %s1182 = scalar_lea.vmem [#allocation2], 240
    %1183 = vst.msk [vmem:[%s1182] sm:$0xff] %vm308, %v1180
    %1184 = vst.msk [vmem:[%s1182 + $0x8] sm:$0xff] %vm308, %v1181
    %s1186 = sor.u32 256, 80
    %1187 = vbcast.lane.b32.xlu0 %v673, %s1186
    %v1188 = vpop.permute.xlu0 %1187
    %s1190 = sor.u32 256, 88
    %1191 = vbcast.lane.b32.xlu0 %v673, %s1190
    %v1192 = vpop.permute.xlu0 %1191
    %s1194 = sor.u32 256, 80
    %1195 = vbcast.lane.b32.xlu0 %v685, %s1194
    %v1196 = vpop.permute.xlu0 %1195
    %s1198 = sor.u32 256, 88
    %1199 = vbcast.lane.b32.xlu0 %v685, %s1198
    %v1200 = vpop.permute.xlu0 %1199
    %s1202 = sor.u32 256, 80
    %1203 = vbcast.lane.b32.xlu0 %v697, %s1202
    %v1204 = vpop.permute.xlu0 %1203
    %s1206 = sor.u32 256, 88
    %1207 = vbcast.lane.b32.xlu0 %v697, %s1206
    %v1208 = vpop.permute.xlu0 %1207
    %s1210 = sor.u32 256, 80
    %1211 = vbcast.lane.b32.xlu0 %v709, %s1210
    %v1212 = vpop.permute.xlu0 %1211
    %s1214 = sor.u32 256, 88
    %1215 = vbcast.lane.b32.xlu0 %v709, %s1214
    %v1216 = vpop.permute.xlu0 %1215
    %s1218 = sor.u32 256, 80
    %1219 = vbcast.lane.b32.xlu0 %v721, %s1218
    %v1220 = vpop.permute.xlu0 %1219
    %s1222 = sor.u32 256, 88
    %1223 = vbcast.lane.b32.xlu0 %v721, %s1222
    %v1224 = vpop.permute.xlu0 %1223
    %s1226 = sor.u32 256, 80
    %1227 = vbcast.lane.b32.xlu0 %v733, %s1226
    %v1228 = vpop.permute.xlu0 %1227
    %s1230 = sor.u32 256, 88
    %1231 = vbcast.lane.b32.xlu0 %v733, %s1230
    %v1232 = vpop.permute.xlu0 %1231
    %s1234 = sor.u32 256, 80
    %1235 = vbcast.lane.b32.xlu0 %v745, %s1234
    %v1236 = vpop.permute.xlu0 %1235
    %s1238 = sor.u32 256, 88
    %1239 = vbcast.lane.b32.xlu0 %v745, %s1238
    %v1240 = vpop.permute.xlu0 %1239
    %s1242 = sor.u32 256, 80
    %1243 = vbcast.lane.b32.xlu0 %v757, %s1242
    %v1244 = vpop.permute.xlu0 %1243
    %s1246 = sor.u32 256, 88
    %1247 = vbcast.lane.b32.xlu0 %v757, %s1246
    %v1248 = vpop.permute.xlu0 %1247
    %s1250 = sor.u32 256, 80
    %1251 = vbcast.lane.b32.xlu0 %v769, %s1250
    %v1252 = vpop.permute.xlu0 %1251
    %s1254 = sor.u32 256, 88
    %1255 = vbcast.lane.b32.xlu0 %v769, %s1254
    %v1256 = vpop.permute.xlu0 %1255
    %s1258 = sor.u32 256, 80
    %1259 = vbcast.lane.b32.xlu0 %v781, %s1258
    %v1260 = vpop.permute.xlu0 %1259
    %s1262 = sor.u32 256, 88
    %1263 = vbcast.lane.b32.xlu0 %v781, %s1262
    %v1264 = vpop.permute.xlu0 %1263
    %s1266 = sor.u32 256, 80
    %1267 = vbcast.lane.b32.xlu0 %v793, %s1266
    %v1268 = vpop.permute.xlu0 %1267
    %s1270 = sor.u32 256, 88
    %1271 = vbcast.lane.b32.xlu0 %v793, %s1270
    %v1272 = vpop.permute.xlu0 %1271
    %s1274 = sor.u32 256, 80
    %1275 = vbcast.lane.b32.xlu0 %v805, %s1274
    %v1276 = vpop.permute.xlu0 %1275
    %s1278 = sor.u32 256, 88
    %1279 = vbcast.lane.b32.xlu0 %v805, %s1278
    %v1280 = vpop.permute.xlu0 %1279
    %s1282 = sor.u32 256, 80
    %1283 = vbcast.lane.b32.xlu0 %v817, %s1282
    %v1284 = vpop.permute.xlu0 %1283
    %s1286 = sor.u32 256, 88
    %1287 = vbcast.lane.b32.xlu0 %v817, %s1286
    %v1288 = vpop.permute.xlu0 %1287
    %s1290 = sor.u32 256, 80
    %1291 = vbcast.lane.b32.xlu0 %v829, %s1290
    %v1292 = vpop.permute.xlu0 %1291
    %s1294 = sor.u32 256, 88
    %1295 = vbcast.lane.b32.xlu0 %v829, %s1294
    %v1296 = vpop.permute.xlu0 %1295
    %s1298 = sor.u32 256, 80
    %1299 = vbcast.lane.b32.xlu0 %v841, %s1298
    %v1300 = vpop.permute.xlu0 %1299
    %s1302 = sor.u32 256, 88
    %1303 = vbcast.lane.b32.xlu0 %v841, %s1302
    %v1304 = vpop.permute.xlu0 %1303
    %s1306 = sor.u32 256, 80
    %1307 = vbcast.lane.b32.xlu0 %v853, %s1306
    %v1308 = vpop.permute.xlu0 %1307
    %s1310 = sor.u32 256, 88
    %1311 = vbcast.lane.b32.xlu0 %v853, %s1310
    %v1312 = vpop.permute.xlu0 %1311
    %v1313 = vld [vmem:[#allocation2] sm:$0xff]
    %v1314 = vld [vmem:[#allocation2 + $0x8] sm:$0xff]
    %v1315 = vld [vmem:[#allocation2 + $0x10] sm:$0xff]
    %v1316 = vld [vmem:[#allocation2 + $0x18] sm:$0xff]
    %v1317 = vld [vmem:[#allocation2 + $0x20] sm:$0xff]
    %v1318 = vld [vmem:[#allocation2 + $0x28] sm:$0xff]
    %v1319 = vld [vmem:[#allocation2 + $0x30] sm:$0xff]
    %v1320 = vld [vmem:[#allocation2 + $0x38] sm:$0xff]
    %v1321 = vld [vmem:[#allocation2 + $0x40] sm:$0xff]
    %v1322 = vld [vmem:[#allocation2 + $0x48] sm:$0xff]
    %v1323 = vld [vmem:[#allocation2 + $0x50] sm:$0xff]
    %v1324 = vld [vmem:[#allocation2 + $0x58] sm:$0xff]
    %v1325 = vld [vmem:[#allocation2 + $0x60] sm:$0xff]
    %v1326 = vld [vmem:[#allocation2 + $0x68] sm:$0xff]
    %v1327 = vld [vmem:[#allocation2 + $0x70] sm:$0xff]
    %v1328 = vld [vmem:[#allocation2 + $0x78] sm:$0xff]
    %v1329 = vld [vmem:[#allocation2 + $0x80] sm:$0xff]
    %v1330 = vld [vmem:[#allocation2 + $0x88] sm:$0xff]
    %v1331 = vld [vmem:[#allocation2 + $0x90] sm:$0xff]
    %v1332 = vld [vmem:[#allocation2 + $0x98] sm:$0xff]
    %v1333 = vld [vmem:[#allocation2 + $0xa0] sm:$0xff]
    %v1334 = vld [vmem:[#allocation2 + $0xa8] sm:$0xff]
    %v1335 = vld [vmem:[#allocation2 + $0xb0] sm:$0xff]
    %v1336 = vld [vmem:[#allocation2 + $0xb8] sm:$0xff]
    %v1337 = vld [vmem:[#allocation2 + $0xc0] sm:$0xff]
    %v1338 = vld [vmem:[#allocation2 + $0xc8] sm:$0xff]
    %v1339 = vld [vmem:[#allocation2 + $0xd0] sm:$0xff]
    %v1340 = vld [vmem:[#allocation2 + $0xd8] sm:$0xff]
    %v1341 = vld [vmem:[#allocation2 + $0xe0] sm:$0xff]
    %v1342 = vld [vmem:[#allocation2 + $0xe8] sm:$0xff]
    %v1343 = vld [vmem:[#allocation2 + $0xf0] sm:$0xff]
    %v1344 = vld [vmem:[#allocation2 + $0xf8] sm:$0xff]
    %v1345 = vmul.f32 %v1188, %v1313
    %v1346 = vmul.f32 %v1192, %v1314
    %v1347 = vmul.f32 %v1196, %v1315
    %v1348 = vmul.f32 %v1200, %v1316
    %v1349 = vmul.f32 %v1204, %v1317
    %v1350 = vmul.f32 %v1208, %v1318
    %v1351 = vmul.f32 %v1212, %v1319
    %v1352 = vmul.f32 %v1216, %v1320
    %v1353 = vmul.f32 %v1220, %v1321
    %v1354 = vmul.f32 %v1224, %v1322
    %v1355 = vmul.f32 %v1228, %v1323
    %v1356 = vmul.f32 %v1232, %v1324
    %v1357 = vmul.f32 %v1236, %v1325
    %v1358 = vmul.f32 %v1240, %v1326
    %v1359 = vmul.f32 %v1244, %v1327
    %v1360 = vmul.f32 %v1248, %v1328
    %v1361 = vmul.f32 %v1252, %v1329
    %v1362 = vmul.f32 %v1256, %v1330
    %v1363 = vmul.f32 %v1260, %v1331
    %v1364 = vmul.f32 %v1264, %v1332
    %v1365 = vmul.f32 %v1268, %v1333
    %v1366 = vmul.f32 %v1272, %v1334
    %v1367 = vmul.f32 %v1276, %v1335
    %v1368 = vmul.f32 %v1280, %v1336
    %v1369 = vmul.f32 %v1284, %v1337
    %v1370 = vmul.f32 %v1288, %v1338
    %v1371 = vmul.f32 %v1292, %v1339
    %v1372 = vmul.f32 %v1296, %v1340
    %v1373 = vmul.f32 %v1300, %v1341
    %v1374 = vmul.f32 %v1304, %v1342
    %v1375 = vmul.f32 %v1308, %v1343
    %v1376 = vmul.f32 %v1312, %v1344
    %v1377 = vsel %vm308, %v1345, 0.0
    %v1378 = vsel %vm308, %v1346, 0.0
    %v1379 = vadd.f32 %v1377, %v1378
    %v1380 = vrot.slane %v1379, 4
    %v1381 = vadd.f32 %v1379, %v1380
    %v1382 = vrot.slane %v1381, 2
    %v1383 = vadd.f32 %v1381, %v1382
    %v1384 = vrot.slane %v1383, 1
    %v1385 = vadd.f32 %v1383, %v1384
    %v1386 = vsel %vm308, %v1347, 0.0
    %v1387 = vsel %vm308, %v1348, 0.0
    %v1388 = vadd.f32 %v1386, %v1387
    %v1389 = vrot.slane %v1388, 4
    %v1390 = vadd.f32 %v1388, %v1389
    %v1391 = vrot.slane %v1390, 2
    %v1392 = vadd.f32 %v1390, %v1391
    %v1393 = vrot.slane %v1392, 1
    %v1394 = vadd.f32 %v1392, %v1393
    %v1395 = vsel %vm308, %v1349, 0.0
    %v1396 = vsel %vm308, %v1350, 0.0
    %v1397 = vadd.f32 %v1395, %v1396
    %v1398 = vrot.slane %v1397, 4
    %v1399 = vadd.f32 %v1397, %v1398
    %v1400 = vrot.slane %v1399, 2
    %v1401 = vadd.f32 %v1399, %v1400
    %v1402 = vrot.slane %v1401, 1
    %v1403 = vadd.f32 %v1401, %v1402
    %v1404 = vsel %vm308, %v1351, 0.0
    %v1405 = vsel %vm308, %v1352, 0.0
    %v1406 = vadd.f32 %v1404, %v1405
    %v1407 = vrot.slane %v1406, 4
    %v1408 = vadd.f32 %v1406, %v1407
    %v1409 = vrot.slane %v1408, 2
    %v1410 = vadd.f32 %v1408, %v1409
    %v1411 = vrot.slane %v1410, 1
    %v1412 = vadd.f32 %v1410, %v1411
    %v1413 = vsel %vm308, %v1353, 0.0
    %v1414 = vsel %vm308, %v1354, 0.0
    %v1415 = vadd.f32 %v1413, %v1414
    %v1416 = vrot.slane %v1415, 4
    %v1417 = vadd.f32 %v1415, %v1416
    %v1418 = vrot.slane %v1417, 2
    %v1419 = vadd.f32 %v1417, %v1418
    %v1420 = vrot.slane %v1419, 1
    %v1421 = vadd.f32 %v1419, %v1420
    %v1422 = vsel %vm308, %v1355, 0.0
    %v1423 = vsel %vm308, %v1356, 0.0
    %v1424 = vadd.f32 %v1422, %v1423
    %v1425 = vrot.slane %v1424, 4
    %v1426 = vadd.f32 %v1424, %v1425
    %v1427 = vrot.slane %v1426, 2
    %v1428 = vadd.f32 %v1426, %v1427
    %v1429 = vrot.slane %v1428, 1
    %v1430 = vadd.f32 %v1428, %v1429
    %v1431 = vsel %vm308, %v1357, 0.0
    %v1432 = vsel %vm308, %v1358, 0.0
    %v1433 = vadd.f32 %v1431, %v1432
    %v1434 = vrot.slane %v1433, 4
    %v1435 = vadd.f32 %v1433, %v1434
    %v1436 = vrot.slane %v1435, 2
    %v1437 = vadd.f32 %v1435, %v1436
    %v1438 = vrot.slane %v1437, 1
    %v1439 = vadd.f32 %v1437, %v1438
    %v1440 = vsel %vm308, %v1359, 0.0
    %v1441 = vsel %vm308, %v1360, 0.0
    %v1442 = vadd.f32 %v1440, %v1441
    %v1443 = vrot.slane %v1442, 4
    %v1444 = vadd.f32 %v1442, %v1443
    %v1445 = vrot.slane %v1444, 2
    %v1446 = vadd.f32 %v1444, %v1445
    %v1447 = vrot.slane %v1446, 1
    %v1448 = vadd.f32 %v1446, %v1447
    %v1449 = vsel %vm308, %v1361, 0.0
    %v1450 = vsel %vm308, %v1362, 0.0
    %v1451 = vadd.f32 %v1449, %v1450
    %v1452 = vrot.slane %v1451, 4
    %v1453 = vadd.f32 %v1451, %v1452
    %v1454 = vrot.slane %v1453, 2
    %v1455 = vadd.f32 %v1453, %v1454
    %v1456 = vrot.slane %v1455, 1
    %v1457 = vadd.f32 %v1455, %v1456
    %v1458 = vsel %vm308, %v1363, 0.0
    %v1459 = vsel %vm308, %v1364, 0.0
    %v1460 = vadd.f32 %v1458, %v1459
    %v1461 = vrot.slane %v1460, 4
    %v1462 = vadd.f32 %v1460, %v1461
    %v1463 = vrot.slane %v1462, 2
    %v1464 = vadd.f32 %v1462, %v1463
    %v1465 = vrot.slane %v1464, 1
    %v1466 = vadd.f32 %v1464, %v1465
    %v1467 = vsel %vm308, %v1365, 0.0
    %v1468 = vsel %vm308, %v1366, 0.0
    %v1469 = vadd.f32 %v1467, %v1468
    %v1470 = vrot.slane %v1469, 4
    %v1471 = vadd.f32 %v1469, %v1470
    %v1472 = vrot.slane %v1471, 2
    %v1473 = vadd.f32 %v1471, %v1472
    %v1474 = vrot.slane %v1473, 1
    %v1475 = vadd.f32 %v1473, %v1474
    %v1476 = vsel %vm308, %v1367, 0.0
    %v1477 = vsel %vm308, %v1368, 0.0
    %v1478 = vadd.f32 %v1476, %v1477
    %v1479 = vrot.slane %v1478, 4
    %v1480 = vadd.f32 %v1478, %v1479
    %v1481 = vrot.slane %v1480, 2
    %v1482 = vadd.f32 %v1480, %v1481
    %v1483 = vrot.slane %v1482, 1
    %v1484 = vadd.f32 %v1482, %v1483
    %v1485 = vsel %vm308, %v1369, 0.0
    %v1486 = vsel %vm308, %v1370, 0.0
    %v1487 = vadd.f32 %v1485, %v1486
    %v1488 = vrot.slane %v1487, 4
    %v1489 = vadd.f32 %v1487, %v1488
    %v1490 = vrot.slane %v1489, 2
    %v1491 = vadd.f32 %v1489, %v1490
    %v1492 = vrot.slane %v1491, 1
    %v1493 = vadd.f32 %v1491, %v1492
    %v1494 = vsel %vm308, %v1371, 0.0
    %v1495 = vsel %vm308, %v1372, 0.0
    %v1496 = vadd.f32 %v1494, %v1495
    %v1497 = vrot.slane %v1496, 4
    %v1498 = vadd.f32 %v1496, %v1497
    %v1499 = vrot.slane %v1498, 2
    %v1500 = vadd.f32 %v1498, %v1499
    %v1501 = vrot.slane %v1500, 1
    %v1502 = vadd.f32 %v1500, %v1501
    %v1503 = vsel %vm308, %v1373, 0.0
    %v1504 = vsel %vm308, %v1374, 0.0
    %v1505 = vadd.f32 %v1503, %v1504
    %v1506 = vrot.slane %v1505, 4
    %v1507 = vadd.f32 %v1505, %v1506
    %v1508 = vrot.slane %v1507, 2
    %v1509 = vadd.f32 %v1507, %v1508
    %v1510 = vrot.slane %v1509, 1
    %v1511 = vadd.f32 %v1509, %v1510
    %v1512 = vsel %vm308, %v1375, 0.0
    %v1513 = vsel %vm308, %v1376, 0.0
    %v1514 = vadd.f32 %v1512, %v1513
    %v1515 = vrot.slane %v1514, 4
    %v1516 = vadd.f32 %v1514, %v1515
    %v1517 = vrot.slane %v1516, 2
    %v1518 = vadd.f32 %v1516, %v1517
    %v1519 = vrot.slane %v1518, 1
    %v1520 = vadd.f32 %v1518, %v1519
    %v1521 = vld [vmem:[#allocation6] sm:$0x1]
    %v1523 = vlaneseq
    %v1524 = vshrl.u32 %v1523, 7
    %v1525 = vsub.s32 0, %v1524
    %v1526 = vrot.slane %v1521, %v1525
    %v1528 = vmul.f32 %v273, %v1526
    %v1529 = vmul.f32 %v274, %v1526
    %v1532 = vrot.slane %v1528, 1
    %v1533 = vrot.slane %v1528, 2
    %v1534 = vrot.slane %v1528, 3
    %v1535 = vrot.slane %v1528, 4
    %v1536 = vrot.slane %v1528, 5
    %v1537 = vrot.slane %v1528, 6
    %v1538 = vrot.slane %v1528, 7
    %v1539 = vrot.slane %v1529, 1
    %v1540 = vrot.slane %v1529, 2
    %v1541 = vrot.slane %v1529, 3
    %v1542 = vrot.slane %v1529, 4
    %v1543 = vrot.slane %v1529, 5
    %v1544 = vrot.slane %v1529, 6
    %v1545 = vrot.slane %v1529, 7
    %v1562 = vadd.f32 %v1385, %v1528
    %v1563 = vadd.f32 %v1394, %v1532
    %v1564 = vadd.f32 %v1403, %v1533
    %v1565 = vadd.f32 %v1412, %v1534
    %v1566 = vadd.f32 %v1421, %v1535
    %v1567 = vadd.f32 %v1430, %v1536
    %v1568 = vadd.f32 %v1439, %v1537
    %v1569 = vadd.f32 %v1448, %v1538
    %v1570 = vadd.f32 %v1457, %v1529
    %v1571 = vadd.f32 %v1466, %v1539
    %v1572 = vadd.f32 %v1475, %v1540
    %v1573 = vadd.f32 %v1484, %v1541
    %v1574 = vadd.f32 %v1493, %v1542
    %v1575 = vadd.f32 %v1502, %v1543
    %v1576 = vadd.f32 %v1511, %v1544
    %v1577 = vadd.f32 %v1520, %v1545
    %v1578 = vsub.f32 0.0, %v163
    %v1579 = vsub.f32 0.0, %v166
    %v1580 = vmul.f32 %v1578, 1.442695
    %v1581 = vpow.pop %v1580
    %v1582 = vmul.f32 %v1579, 1.442695
    %v1583 = vpow.pop %v1582
    %v1584 = vadd.f32 %v1581, 1.0
    %v1585 = vadd.f32 %v1583, 1.0
    %v1586 = vrcp.pop %v1584
    %v1587 = vrcp.pop %v1585
    %v1588 = vmul.f32 %v163, %v1586
    %v1589 = vmul.f32 %v166, %v1587
    %v1592 = vrot.slane %v1588, 1
    %v1593 = vrot.slane %v1588, 2
    %v1594 = vrot.slane %v1588, 3
    %v1595 = vrot.slane %v1588, 4
    %v1596 = vrot.slane %v1588, 5
    %v1597 = vrot.slane %v1588, 6
    %v1598 = vrot.slane %v1588, 7
    %v1599 = vrot.slane %v1589, 1
    %v1600 = vrot.slane %v1589, 2
    %v1601 = vrot.slane %v1589, 3
    %v1602 = vrot.slane %v1589, 4
    %v1603 = vrot.slane %v1589, 5
    %v1604 = vrot.slane %v1589, 6
    %v1605 = vrot.slane %v1589, 7
    %1606 = vrot.lane.b32.xlu0 %v1588, 64
    %v1607 = vpop.permute.xlu0 %1606
    %1608 = vrot.lane.b32.xlu0 %v1592, 64
    %v1609 = vpop.permute.xlu0 %1608
    %1610 = vrot.lane.b32.xlu0 %v1593, 64
    %v1611 = vpop.permute.xlu0 %1610
    %1612 = vrot.lane.b32.xlu0 %v1594, 64
    %v1613 = vpop.permute.xlu0 %1612
    %1614 = vrot.lane.b32.xlu0 %v1595, 64
    %v1615 = vpop.permute.xlu0 %1614
    %1616 = vrot.lane.b32.xlu0 %v1596, 64
    %v1617 = vpop.permute.xlu0 %1616
    %1618 = vrot.lane.b32.xlu0 %v1597, 64
    %v1619 = vpop.permute.xlu0 %1618
    %1620 = vrot.lane.b32.xlu0 %v1598, 64
    %v1621 = vpop.permute.xlu0 %1620
    %1622 = vrot.lane.b32.xlu0 %v1589, 64
    %v1623 = vpop.permute.xlu0 %1622
    %1624 = vrot.lane.b32.xlu0 %v1599, 64
    %v1625 = vpop.permute.xlu0 %1624
    %1626 = vrot.lane.b32.xlu0 %v1600, 64
    %v1627 = vpop.permute.xlu0 %1626
    %1628 = vrot.lane.b32.xlu0 %v1601, 64
    %v1629 = vpop.permute.xlu0 %1628
    %1630 = vrot.lane.b32.xlu0 %v1602, 64
    %v1631 = vpop.permute.xlu0 %1630
    %1632 = vrot.lane.b32.xlu0 %v1603, 64
    %v1633 = vpop.permute.xlu0 %1632
    %1634 = vrot.lane.b32.xlu0 %v1604, 64
    %v1635 = vpop.permute.xlu0 %1634
    %1636 = vrot.lane.b32.xlu0 %v1605, 64
    %v1637 = vpop.permute.xlu0 %1636
    %v1654 = vmul.f32 %v1562, %v1607
    %v1655 = vmul.f32 %v1563, %v1609
    %v1656 = vmul.f32 %v1564, %v1611
    %v1657 = vmul.f32 %v1565, %v1613
    %v1658 = vmul.f32 %v1566, %v1615
    %v1659 = vmul.f32 %v1567, %v1617
    %v1660 = vmul.f32 %v1568, %v1619
    %v1661 = vmul.f32 %v1569, %v1621
    %v1662 = vmul.f32 %v1570, %v1623
    %v1663 = vmul.f32 %v1571, %v1625
    %v1664 = vmul.f32 %v1572, %v1627
    %v1665 = vmul.f32 %v1573, %v1629
    %v1666 = vmul.f32 %v1574, %v1631
    %v1667 = vmul.f32 %v1575, %v1633
    %v1668 = vmul.f32 %v1576, %v1635
    %v1669 = vmul.f32 %v1577, %v1637
    %v1670 = vpack.c.bf16 %v1654, %v1654
    %v1671 = vpack.c.bf16 %v1655, %v1655
    %v1672 = vpack.c.bf16 %v1656, %v1656
    %v1673 = vpack.c.bf16 %v1657, %v1657
    %v1674 = vpack.c.bf16 %v1658, %v1658
    %v1675 = vpack.c.bf16 %v1659, %v1659
    %v1676 = vpack.c.bf16 %v1660, %v1660
    %v1677 = vpack.c.bf16 %v1661, %v1661
    %v1678 = vpack.c.bf16 %v1662, %v1662
    %v1679 = vpack.c.bf16 %v1663, %v1663
    %v1680 = vpack.c.bf16 %v1664, %v1664
    %v1681 = vpack.c.bf16 %v1665, %v1665
    %v1682 = vpack.c.bf16 %v1666, %v1666
    %v1683 = vpack.c.bf16 %v1667, %v1667
    %v1684 = vpack.c.bf16 %v1668, %v1668
    %v1685 = vpack.c.bf16 %v1669, %v1669
    %v1686 = vld [vmem:[%s8] sm:$0xf]
    %v1687 = vld [vmem:[%s8 + $0x4] sm:$0xf]
    %v1688 = vld [vmem:[%s8 + $0x8] sm:$0xf]
    %v1689 = vld [vmem:[%s8 + $0xc] sm:$0xf]
    %v1690 = vld [vmem:[%s8 + $0x10] sm:$0xf]
    %v1691 = vld [vmem:[%s8 + $0x14] sm:$0xf]
    %v1692 = vld [vmem:[%s8 + $0x18] sm:$0xf]
    %v1693 = vld [vmem:[%s8 + $0x1c] sm:$0xf]
    %v1710 = vunpack.c.l.b16 %v1670
    %v1711 = vunpack.c.l.b16 %v1671
    %v1712 = vunpack.c.l.b16 %v1672
    %v1713 = vunpack.c.l.b16 %v1673
    %v1714 = vunpack.c.l.b16 %v1674
    %v1715 = vunpack.c.l.b16 %v1675
    %v1716 = vunpack.c.l.b16 %v1676
    %v1717 = vunpack.c.l.b16 %v1677
    %v1718 = vunpack.c.l.b16 %v1678
    %v1719 = vunpack.c.l.b16 %v1679
    %v1720 = vunpack.c.l.b16 %v1680
    %v1721 = vunpack.c.l.b16 %v1681
    %v1722 = vunpack.c.l.b16 %v1682
    %v1723 = vunpack.c.l.b16 %v1683
    %v1724 = vunpack.c.l.b16 %v1684
    %v1725 = vunpack.c.l.b16 %v1685
    %v1726 = vrot.slane %v1711, 7
    %vm1727 = vcmask 1041409
    %v1728 = vsel %vm1727, %v1726, %v1710
    %v1729 = vrot.slane %v1712, 6
    %vm1730 = vcmask 1042434
    %v1731 = vsel %vm1730, %v1729, %v1728
    %v1732 = vrot.slane %v1713, 5
    %vm1733 = vcmask 1043459
    %v1734 = vsel %vm1733, %v1732, %v1731
    %v1735 = vrot.slane %v1714, 4
    %vm1736 = vcmask 1044484
    %v1737 = vsel %vm1736, %v1735, %v1734
    %v1738 = vrot.slane %v1715, 3
    %vm1739 = vcmask 1045509
    %v1740 = vsel %vm1739, %v1738, %v1737
    %v1741 = vrot.slane %v1716, 2
    %vm1742 = vcmask 1046534
    %v1743 = vsel %vm1742, %v1741, %v1740
    %v1744 = vrot.slane %v1717, 1
    %vm1745 = vcmask 1047559
    %v1746 = vsel %vm1745, %v1744, %v1743
    %v1747 = vrot.slane %v1719, 7
    %v1748 = vsel %vm1727, %v1747, %v1718
    %v1749 = vrot.slane %v1720, 6
    %v1750 = vsel %vm1730, %v1749, %v1748
    %v1751 = vrot.slane %v1721, 5
    %v1752 = vsel %vm1733, %v1751, %v1750
    %v1753 = vrot.slane %v1722, 4
    %v1754 = vsel %vm1736, %v1753, %v1752
    %v1755 = vrot.slane %v1723, 3
    %v1756 = vsel %vm1739, %v1755, %v1754
    %v1757 = vrot.slane %v1724, 2
    %v1758 = vsel %vm1742, %v1757, %v1756
    %v1759 = vrot.slane %v1725, 1
    %v1760 = vsel %vm1745, %v1759, %v1758
    %v1761 = vpack.c.b16 %v1760, %v1746
    %v1770 = vunpack.c.l.b16 %v1686
    %v1771 = vunpack.c.l.b16 %v1687
    %v1772 = vunpack.c.l.b16 %v1688
    %v1773 = vunpack.c.l.b16 %v1689
    %v1774 = vunpack.c.l.b16 %v1690
    %v1775 = vunpack.c.l.b16 %v1691
    %v1776 = vunpack.c.l.b16 %v1692
    %v1777 = vunpack.c.l.b16 %v1693
    %v1778 = vpack.c.b16 %v1771, %v1770
    %v1779 = vpack.c.b16 %v1773, %v1772
    %v1780 = vpack.c.b16 %v1775, %v1774
    %v1781 = vpack.c.b16 %v1777, %v1776
    %v1787 = vsel %vm308, %v1761, 0
    %1789 = vmatprep.subr.bf16.mxu0 0
    %1790 = vmatpush1.bf16.msra.mxu0 %v1778
    %1791 = vmatprep.subr.bf16.mxu0 0
    %1792 = vmatpush1.bf16.msra.mxu0 %v1779
    %1793 = vmatprep.subr.bf16.mxu0 0
    %1794 = vmatpush1.bf16.msra.mxu0 %v1780
    %1795 = vmatprep.subr.bf16.mxu0 0
    %1796 = vmatpush1.bf16.msra.mxu0 %v1781
    %1797 = vmatprep.subr.bf16.mxu0 0
    %1798 = vmatpush1.bf16.msra.mxu0 0
    %1799 = vmatprep.subr.bf16.mxu0 0
    %1800 = vmatpush1.bf16.msra.mxu0 0
    %1801 = vmatprep.subr.bf16.mxu0 0
    %1802 = vmatpush1.bf16.msra.mxu0 0
    %1803 = vmatprep.subr.bf16.mxu0 0
    %1804 = vmatpush1.bf16.msra.mxu0 0
    %1805 = vmatprep.subr.bf16.mxu0 0
    %1806 = vmatpush1.bf16.msra.mxu0 0
    %1807 = vmatprep.subr.bf16.mxu0 0
    %1808 = vmatpush1.bf16.msra.mxu0 0
    %1809 = vmatprep.subr.bf16.mxu0 0
    %1810 = vmatpush1.bf16.msra.mxu0 0
    %1811 = vmatprep.subr.bf16.mxu0 0
    %1812 = vmatpush1.bf16.msra.mxu0 0
    %1813 = vmatprep.subr.bf16.mxu0 0
    %1814 = vmatpush1.bf16.msra.mxu0 0
    %1815 = vmatprep.subr.bf16.mxu0 0
    %1816 = vmatpush1.bf16.msra.mxu0 0
    %1817 = vmatprep.subr.bf16.mxu0 0
    %1818 = vmatpush1.bf16.msra.mxu0 0
    %1819 = vmatprep.subr.bf16.mxu0 0
    %1820 = vmatpush1.bf16.msra.mxu0 0
    %1821 = vmatprep.mubr.bf16.mxu0 0
    %1822 = vmatmul.mubr.bf16.gmra.mrb[0].mxu0 %v1787
    %v1823 = vpop.f32.mrb[0].mxu0
    %v1824 = vadd.f32 0.0, %v1823
    %v1825 = vpop.f32.mrb[0].mxu0
    %v1826 = vpop.f32.mrb[0].mxu0
    %v1827 = vadd.f32 0.0, %v1826
    %v1828 = vpop.f32.mrb[0].mxu0
    %1829 = vdwg.mxu0
    %v1830 = vadd.f32 %v105, %v1824
    %v1831 = vadd.f32 %v106, %v1827
    %v1832 = vld [vmem:[%s9] sm:$0x1]
    %v1833 = vld [vmem:[%s10] sm:$0x1]
    %v1834 = vsel %vm124, %v1830, 0.0
    %1835 = vadd.xlane.f32.xlu0 %v1834
    %v1836 = vpop.xlane.xlu0 %1835
    %v1837 = vsel %vm124, %v1831, 0.0
    %1838 = vadd.xlane.f32.xlu0 %v1837
    %v1839 = vpop.xlane.xlu0 %1838
    %v1840 = vrcp.pop 32.0
    %v1841 = vmul.f32 %v1836, %v1840
    %v1842 = vmul.f32 %v1839, %v1840
    %v1843 = vsub.f32 %v1830, %v1841
    %v1844 = vsub.f32 %v1831, %v1842
    %v1845 = vmul.f32 %v1843, %v1843
    %v1846 = vmul.f32 %v1844, %v1844
    %v1847 = vsel %vm124, %v1845, 0.0
    %1848 = vadd.xlane.f32.xlu0 %v1847
    %v1849 = vpop.xlane.xlu0 %1848
    %v1850 = vsel %vm124, %v1846, 0.0
    %1851 = vadd.xlane.f32.xlu0 %v1850
    %v1852 = vpop.xlane.xlu0 %1851
    %v1853 = vmul.f32 %v1849, %v1840
    %v1854 = vmul.f32 %v1852, %v1840
    %v1855 = vadd.f32 %v1853, 1e-05
    %v1856 = vadd.f32 %v1854, 1e-05
    %v1857 = vrsqrt.pop %v1855
    %v1858 = vrsqrt.pop %v1856
    %v1859 = vmul.f32 %v1843, %v1857
    %v1860 = vmul.f32 %v1844, %v1858
    %v1862 = vlaneseq
    %v1863 = vshrl.u32 %v1862, 7
    %v1864 = vsub.s32 0, %v1863
    %v1865 = vrot.slane %v1832, %v1864
    %v1867 = vmul.f32 %v1859, %v1865
    %v1868 = vmul.f32 %v1860, %v1865
    %v1870 = vlaneseq
    %v1871 = vshrl.u32 %v1870, 7
    %v1872 = vsub.s32 0, %v1871
    %v1873 = vrot.slane %v1833, %v1872
    %v1875 = vadd.f32 %v1867, %v1873
    %v1876 = vadd.f32 %v1868, %v1873
    %v1877 = vpack.c.bf16 %v1876, %v1875
    %v1878 = vld [vmem:[%s11] sm:$0xf]
    %v1879 = vld [vmem:[%s11 + $0x4] sm:$0xf]
    %v1880 = vld [vmem:[%s11 + $0x8] sm:$0xf]
    %v1881 = vld [vmem:[%s11 + $0xc] sm:$0xf]
    %v1882 = vld [vmem:[#allocation8] sm:$0x1]
    %v1884 = vlaneseq
    %v1885 = vshrl.u32 %v1884, 7
    %v1886 = vsub.s32 0, %v1885
    %v1887 = vrot.slane %v1882, %v1886
    %v1893 = vunpack.c.l.b16 %v1878
    %v1894 = vunpack.c.l.b16 %v1879
    %v1895 = vunpack.c.l.b16 %v1880
    %v1896 = vunpack.c.l.b16 %v1881
    %v1897 = vpack.c.b16 %v1894, %v1893
    %v1898 = vpack.c.b16 %v1896, %v1895
    %v1902 = vsel %vm124, %v1877, 0
    %1904 = vmatprep.subr.bf16.mxu0 0
    %1905 = vmatpush1.bf16.msra.mxu0 %v1897
    %1906 = vmatprep.subr.bf16.mxu0 0
    %1907 = vmatpush1.bf16.msra.mxu0 %v1898
    %1908 = vmatprep.subr.bf16.mxu0 0
    %1909 = vmatpush1.bf16.msra.mxu0 0
    %1910 = vmatprep.subr.bf16.mxu0 0
    %1911 = vmatpush1.bf16.msra.mxu0 0
    %1912 = vmatprep.subr.bf16.mxu0 0
    %1913 = vmatpush1.bf16.msra.mxu0 0
    %1914 = vmatprep.subr.bf16.mxu0 0
    %1915 = vmatpush1.bf16.msra.mxu0 0
    %1916 = vmatprep.subr.bf16.mxu0 0
    %1917 = vmatpush1.bf16.msra.mxu0 0
    %1918 = vmatprep.subr.bf16.mxu0 0
    %1919 = vmatpush1.bf16.msra.mxu0 0
    %1920 = vmatprep.subr.bf16.mxu0 0
    %1921 = vmatpush1.bf16.msra.mxu0 0
    %1922 = vmatprep.subr.bf16.mxu0 0
    %1923 = vmatpush1.bf16.msra.mxu0 0
    %1924 = vmatprep.subr.bf16.mxu0 0
    %1925 = vmatpush1.bf16.msra.mxu0 0
    %1926 = vmatprep.subr.bf16.mxu0 0
    %1927 = vmatpush1.bf16.msra.mxu0 0
    %1928 = vmatprep.subr.bf16.mxu0 0
    %1929 = vmatpush1.bf16.msra.mxu0 0
    %1930 = vmatprep.subr.bf16.mxu0 0
    %1931 = vmatpush1.bf16.msra.mxu0 0
    %1932 = vmatprep.subr.bf16.mxu0 0
    %1933 = vmatpush1.bf16.msra.mxu0 0
    %1934 = vmatprep.subr.bf16.mxu0 0
    %1935 = vmatpush1.bf16.msra.mxu0 0
    %1936 = vmatprep.mubr.bf16.mxu0 0
    %1937 = vmatmul.mubr.bf16.gmra.mrb[0].mxu0 %v1902
    %v1938 = vpop.f32.mrb[0].mxu0
    %v1939 = vadd.f32 %v1887, %v1938
    %v1940 = vpop.f32.mrb[0].mxu0
    %v1941 = vpop.f32.mrb[0].mxu0
    %v1942 = vadd.f32 %v1887, %v1941
    %v1943 = vpop.f32.mrb[0].mxu0
    %1944 = vdwg.mxu0
    %v1945 = vmul.f32 %v1939, 0.5
    %v1946 = vmul.f32 %v1942, 0.5
    %v1947 = vmul.f32 %v1939, 0.70710677
    %v1948 = vmul.f32 %v1942, 0.70710677
    %vm1949 = vcmp.ge.f32.partialorder %v1947, 0.0
    %vm1950 = vcmp.ge.f32.partialorder %v1948, 0.0
    %v1951 = vsel %vm1949, 1.0, -1.0
    %v1952 = vsel %vm1950, 1.0, -1.0
    %v1953 = vand.u32 2147483647, %v1947
    %v1954 = vand.u32 2147483647, %v1948
    %v1955 = vmul.f32 %v1953, 0.3275911
    %v1956 = vmul.f32 %v1954, 0.3275911
    %v1957 = vadd.f32 %v1955, 1.0
    %v1958 = vadd.f32 %v1956, 1.0
    %v1959 = vrcp.pop %v1957
    %v1960 = vmul.f32 1.0, %v1959
    %v1961 = vrcp.pop %v1958
    %v1962 = vmul.f32 1.0, %v1961
    %v1963 = vmul.f32 %v1960, 1.0614054
    %v1964 = vmul.f32 %v1962, 1.0614054
    %v1965 = vadd.f32 %v1963, -1.4531521
    %v1966 = vadd.f32 %v1964, -1.4531521
    %v1967 = vmul.f32 %v1965, %v1960
    %v1968 = vmul.f32 %v1966, %v1962
    %v1969 = vadd.f32 %v1967, 1.4214138
    %v1970 = vadd.f32 %v1968, 1.4214138
    %v1971 = vmul.f32 %v1969, %v1960
    %v1972 = vmul.f32 %v1970, %v1962
    %v1973 = vadd.f32 %v1971, -0.28449672
    %v1974 = vadd.f32 %v1972, -0.28449672
    %v1975 = vmul.f32 %v1973, %v1960
    %v1976 = vmul.f32 %v1974, %v1962
    %v1977 = vadd.f32 %v1975, 0.2548296
    %v1978 = vadd.f32 %v1976, 0.2548296
    %v1979 = vmul.f32 %v1977, %v1960
    %v1980 = vmul.f32 %v1978, %v1962
    %v1981 = vsub.f32 0.0, %v1953
    %v1982 = vsub.f32 0.0, %v1954
    %v1983 = vmul.f32 %v1981, %v1953
    %v1984 = vmul.f32 %v1982, %v1954
    %v1985 = vmul.f32 %v1983, 1.442695
    %v1986 = vpow.pop %v1985
    %v1987 = vmul.f32 %v1984, 1.442695
    %v1988 = vpow.pop %v1987
    %v1989 = vmul.f32 %v1979, %v1986
    %v1990 = vmul.f32 %v1980, %v1988
    %v1991 = vsub.f32 1.0, %v1989
    %v1992 = vsub.f32 1.0, %v1990
    %v1993 = vmul.f32 %v1951, %v1991
    %v1994 = vmul.f32 %v1952, %v1992
    %v1995 = vadd.f32 %v1993, 1.0
    %v1996 = vadd.f32 %v1994, 1.0
    %v1997 = vmul.f32 %v1945, %v1995
    %v1998 = vmul.f32 %v1946, %v1996
    %v1999 = vpack.c.bf16 %v1998, %v1997
    %v2000 = vld [vmem:[%s13] sm:$0xf]
    %v2001 = vld [vmem:[%s13 + $0x4] sm:$0xf]
    %v2002 = vld [vmem:[%s13 + $0x8] sm:$0xf]
    %v2003 = vld [vmem:[%s13 + $0xc] sm:$0xf]
    %v2004 = vld [vmem:[%s13 + $0x10] sm:$0xf]
    %v2005 = vld [vmem:[%s13 + $0x14] sm:$0xf]
    %v2006 = vld [vmem:[%s13 + $0x18] sm:$0xf]
    %v2007 = vld [vmem:[%s13 + $0x1c] sm:$0xf]
    %v2008 = vld [vmem:[#allocation9] sm:$0x1]
    %v2010 = vlaneseq
    %v2011 = vshrl.u32 %v2010, 7
    %v2012 = vsub.s32 0, %v2011
    %v2013 = vrot.slane %v2008, %v2012
    %v2023 = vunpack.c.l.b16 %v2000
    %v2024 = vunpack.c.l.b16 %v2001
    %v2025 = vunpack.c.l.b16 %v2002
    %v2026 = vunpack.c.l.b16 %v2003
    %v2027 = vunpack.c.l.b16 %v2004
    %v2028 = vunpack.c.l.b16 %v2005
    %v2029 = vunpack.c.l.b16 %v2006
    %v2030 = vunpack.c.l.b16 %v2007
    %v2031 = vpack.c.b16 %v2024, %v2023
    %v2032 = vpack.c.b16 %v2026, %v2025
    %v2033 = vpack.c.b16 %v2028, %v2027
    %v2034 = vpack.c.b16 %v2030, %v2029
    %v2040 = vsel %vm308, %v1999, 0
    %2042 = vmatprep.subr.bf16.mxu0 0
    %2043 = vmatpush1.bf16.msra.mxu0 %v2031
    %2044 = vmatprep.subr.bf16.mxu0 0
    %2045 = vmatpush1.bf16.msra.mxu0 %v2032
    %2046 = vmatprep.subr.bf16.mxu0 0
    %2047 = vmatpush1.bf16.msra.mxu0 %v2033
    %2048 = vmatprep.subr.bf16.mxu0 0
    %2049 = vmatpush1.bf16.msra.mxu0 %v2034
    %2050 = vmatprep.subr.bf16.mxu0 0
    %2051 = vmatpush1.bf16.msra.mxu0 0
    %2052 = vmatprep.subr.bf16.mxu0 0
    %2053 = vmatpush1.bf16.msra.mxu0 0
    %2054 = vmatprep.subr.bf16.mxu0 0
    %2055 = vmatpush1.bf16.msra.mxu0 0
    %2056 = vmatprep.subr.bf16.mxu0 0
    %2057 = vmatpush1.bf16.msra.mxu0 0
    %2058 = vmatprep.subr.bf16.mxu0 0
    %2059 = vmatpush1.bf16.msra.mxu0 0
    %2060 = vmatprep.subr.bf16.mxu0 0
    %2061 = vmatpush1.bf16.msra.mxu0 0
    %2062 = vmatprep.subr.bf16.mxu0 0
    %2063 = vmatpush1.bf16.msra.mxu0 0
    %2064 = vmatprep.subr.bf16.mxu0 0
    %2065 = vmatpush1.bf16.msra.mxu0 0
    %2066 = vmatprep.subr.bf16.mxu0 0
    %2067 = vmatpush1.bf16.msra.mxu0 0
    %2068 = vmatprep.subr.bf16.mxu0 0
    %2069 = vmatpush1.bf16.msra.mxu0 0
    %2070 = vmatprep.subr.bf16.mxu0 0
    %2071 = vmatpush1.bf16.msra.mxu0 0
    %2072 = vmatprep.subr.bf16.mxu0 0
    %2073 = vmatpush1.bf16.msra.mxu0 0
    %2074 = vmatprep.mubr.bf16.mxu0 0
    %2075 = vmatmul.mubr.bf16.gmra.mrb[0].mxu0 %v2040
    %v2076 = vpop.f32.mrb[0].mxu0
    %v2077 = vadd.f32 %v2013, %v2076
    %v2078 = vpop.f32.mrb[0].mxu0
    %v2079 = vpop.f32.mrb[0].mxu0
    %v2080 = vadd.f32 %v2013, %v2079
    %v2081 = vpop.f32.mrb[0].mxu0
    %2082 = vdwg.mxu0
    %v2083 = vmul.f32 %v2077, 0.5
    %v2084 = vmul.f32 %v2080, 0.5
    %v2085 = vmul.f32 %v2077, 0.70710677
    %v2086 = vmul.f32 %v2080, 0.70710677
    %vm2087 = vcmp.ge.f32.partialorder %v2085, 0.0
    %vm2088 = vcmp.ge.f32.partialorder %v2086, 0.0
    %v2089 = vsel %vm2087, 1.0, -1.0
    %v2090 = vsel %vm2088, 1.0, -1.0
    %v2091 = vand.u32 2147483647, %v2085
    %v2092 = vand.u32 2147483647, %v2086
    %v2093 = vmul.f32 %v2091, 0.3275911
    %v2094 = vmul.f32 %v2092, 0.3275911
    %v2095 = vadd.f32 %v2093, 1.0
    %v2096 = vadd.f32 %v2094, 1.0
    %v2097 = vrcp.pop %v2095
    %v2098 = vmul.f32 1.0, %v2097
    %v2099 = vrcp.pop %v2096
    %v2100 = vmul.f32 1.0, %v2099
    %v2101 = vmul.f32 %v2098, 1.0614054
    %v2102 = vmul.f32 %v2100, 1.0614054
    %v2103 = vadd.f32 %v2101, -1.4531521
    %v2104 = vadd.f32 %v2102, -1.4531521
    %v2105 = vmul.f32 %v2103, %v2098
    %v2106 = vmul.f32 %v2104, %v2100
    %v2107 = vadd.f32 %v2105, 1.4214138
    %v2108 = vadd.f32 %v2106, 1.4214138
    %v2109 = vmul.f32 %v2107, %v2098
    %v2110 = vmul.f32 %v2108, %v2100
    %v2111 = vadd.f32 %v2109, -0.28449672
    %v2112 = vadd.f32 %v2110, -0.28449672
    %v2113 = vmul.f32 %v2111, %v2098
    %v2114 = vmul.f32 %v2112, %v2100
    %v2115 = vadd.f32 %v2113, 0.2548296
    %v2116 = vadd.f32 %v2114, 0.2548296
    %v2117 = vmul.f32 %v2115, %v2098
    %v2118 = vmul.f32 %v2116, %v2100
    %v2119 = vsub.f32 0.0, %v2091
    %v2120 = vsub.f32 0.0, %v2092
    %v2121 = vmul.f32 %v2119, %v2091
    %v2122 = vmul.f32 %v2120, %v2092
    %v2123 = vmul.f32 %v2121, 1.442695
    %v2124 = vpow.pop %v2123
    %v2125 = vmul.f32 %v2122, 1.442695
    %v2126 = vpow.pop %v2125
    %v2127 = vmul.f32 %v2117, %v2124
    %v2128 = vmul.f32 %v2118, %v2126
    %v2129 = vsub.f32 1.0, %v2127
    %v2130 = vsub.f32 1.0, %v2128
    %v2131 = vmul.f32 %v2089, %v2129
    %v2132 = vmul.f32 %v2090, %v2130
    %v2133 = vadd.f32 %v2131, 1.0
    %v2134 = vadd.f32 %v2132, 1.0
    %v2135 = vmul.f32 %v2083, %v2133
    %v2136 = vmul.f32 %v2084, %v2134
    %v2137 = vadd.f32 %v1875, %v2135
    %v2138 = vadd.f32 %v1876, %v2136
    %v2139 = vld [vmem:[%s15] sm:$0x1]
    %v2140 = vld [vmem:[%s16] sm:$0x1]
    %v2141 = vsel %vm124, %v2137, 0.0
    %2142 = vadd.xlane.f32.xlu0 %v2141
    %v2143 = vpop.xlane.xlu0 %2142
    %v2144 = vsel %vm124, %v2138, 0.0
    %2145 = vadd.xlane.f32.xlu0 %v2144
    %v2146 = vpop.xlane.xlu0 %2145
    %v2147 = vmul.f32 %v2143, %v1840
    %v2148 = vmul.f32 %v2146, %v1840
    %v2149 = vsub.f32 %v2137, %v2147
    %v2150 = vsub.f32 %v2138, %v2148
    %v2151 = vmul.f32 %v2149, %v2149
    %v2152 = vmul.f32 %v2150, %v2150
    %v2153 = vsel %vm124, %v2151, 0.0
    %2154 = vadd.xlane.f32.xlu0 %v2153
    %v2155 = vpop.xlane.xlu0 %2154
    %v2156 = vsel %vm124, %v2152, 0.0
    %2157 = vadd.xlane.f32.xlu0 %v2156
    %v2158 = vpop.xlane.xlu0 %2157
    %v2159 = vmul.f32 %v2155, %v1840
    %v2160 = vmul.f32 %v2158, %v1840
    %v2161 = vadd.f32 %v2159, 1e-05
    %v2162 = vadd.f32 %v2160, 1e-05
    %v2163 = vrsqrt.pop %v2161
    %v2164 = vrsqrt.pop %v2162
    %v2165 = vmul.f32 %v2149, %v2163
    %v2166 = vmul.f32 %v2150, %v2164
    %v2168 = vlaneseq
    %v2169 = vshrl.u32 %v2168, 7
    %v2170 = vsub.s32 0, %v2169
    %v2171 = vrot.slane %v2139, %v2170
    %v2173 = vmul.f32 %v2165, %v2171
    %v2174 = vmul.f32 %v2166, %v2171
    %v2176 = vlaneseq
    %v2177 = vshrl.u32 %v2176, 7
    %v2178 = vsub.s32 0, %v2177
    %v2179 = vrot.slane %v2140, %v2178
    %v2181 = vadd.f32 %v2173, %v2179
    %v2182 = vadd.f32 %v2174, %v2179
    %2183 = vst.msk [vmem:[#allocation11] sm:$0xff] %vm124, %v2181
    %2184 = vst.msk [vmem:[#allocation11 + $0x8] sm:$0xff] %vm124, %v2182
    // Predicated region
    $region86: #{mamba_block.1} parent=1 // pred_check
      _
    $region87: #{mamba_block.1} parent=1 // pred_check_branch
      %2186 = sbr.rel (0) target = $region89
    $region88: #{mamba_block.1} parent=1 // pred_region
      %s2188 = ssub.s32 256, 256
      %2189 = vsyncadd [#allocation5], %s2188
      %s2190 = sshll.u32 [#allocation11], 4
      %s2191 = int_to_ptr.vmem [resolvable:$true] %s2190
      %2196 = dma.vmem_to_hbm [thread:$0]  %s2191, 256, %s17, [#allocation5], 128, 128, 8
    $region89: #{mamba_block.1} parent=1 // pred_fallthru
      _
    // Predicated region
    $region90: #{mamba_block.1} parent=1 // pred_check
      _
    $region91: #{mamba_block.1} parent=1 // pred_check_branch
      %2198 = sbr.rel (0) target = $region93
    $region92: #{mamba_block.1} parent=1 // pred_region
      %2199 = dma.done [#allocation5], 256
    $region93: #{mamba_block.1} parent=1 // pred_fallthru
      _
    %2200 = vsyncpa [#allocation4], 1
    %2201 = vsyncpa [#allocation7], 1
    %2202 = vsyncpa [#allocation10], 1
    %2203 = vsyncpa [#allocation5], 1

</llo_original>
